<compile_context>
chip_gen: v6e
topology: v6e:2x2x1
jax: 0.10.0
libtpu: 0.0.40
codegen_flags: <defaults>
</compile_context>

<pallas_src>
import math

import jax
import jax.numpy as jnp
from jax import lax
from jax.experimental import pallas as pl
from jax.experimental.pallas import tpu as pltpu

NUM_HEADS = 4
LN_EPS = 1e-5


# ---------------------------------------------------------------------------
# Fused kernel: LayerNorm -> QKV projection -> multi-head attention ->
#               output projection + residual   (one batch element per step)
# ---------------------------------------------------------------------------
def _fused_kernel(num_heads, head_dim, seq_len, eps):
    channels = num_heads * head_dim

    def kernel(x_ref, wqkv_ref, bqkv_ref, wout_ref, bout_ref, o_ref,
               qkv_sc, attn_sc):
        # ---- LayerNorm over channels (gamma/beta folded into wqkv/bqkv) ----
        x = x_ref[...]                                    # (C, L) f32, NCHW layout
        mean = jnp.mean(x, axis=0, keepdims=True)         # (1, L)
        xc = x - mean
        var = jnp.mean(xc * xc, axis=0, keepdims=True)    # (1, L)
        xhat = (xc * lax.rsqrt(var + eps)).astype(jnp.bfloat16)

        # ---- fused QKV projection (transposed: qkv^T = W_qkv^T @ xhat) -----
        qkv = jnp.dot(wqkv_ref[...], xhat,
                      preferred_element_type=jnp.float32)  # (3C, L) f32
        qkv = qkv + bqkv_ref[...]                           # (3C, 1) lane-bcast
        # Heads live on the sublane axis -> split into (3*H, hd, L) blocks.
        qkv_sc[...] = qkv.astype(jnp.bfloat16).reshape(
            3 * num_heads, head_dim, seq_len)

        # ---- multi-head attention: fori_loop over heads, scratch output ----
        def head_body(h, carry):
            q_t = qkv_sc[h]                       # (hd, L) bf16, pre-scaled
            k_t = qkv_sc[num_heads + h]           # (hd, L) bf16
            v_t = qkv_sc[2 * num_heads + h]       # (hd, L) bf16
            # s[j, i] = K_j . Q_i  (keys on sublanes, queries on lanes)
            s = lax.dot_general(k_t, q_t, (((0,), (0,)), ((), ())),
                                preferred_element_type=jnp.float32)  # (L, L)
            m = jnp.max(s, axis=0, keepdims=True)                    # (1, L)
            p = jnp.exp(s - m)                                        # (L, L)
            denom = jnp.sum(p, axis=0, keepdims=True)                 # (1, L)
            # o^T = V^T @ P_unnormalized, K = L = 256 full MXU contraction.
            o_t = jnp.dot(v_t, p.astype(jnp.bfloat16),
                          preferred_element_type=jnp.float32)         # (hd, L)
            # Deferred softmax normalization on the small (hd, L) accumulator.
            o_t = o_t * pl.reciprocal(denom, approx=False)
            attn_sc[h] = o_t.astype(jnp.bfloat16)
            return carry

        lax.fori_loop(0, num_heads, head_body, 0)

        # ---- output projection + residual (still transposed / lane-dense) --
        attn = attn_sc[...].reshape(channels, seq_len)                # (C, L) bf16
        out = jnp.dot(wout_ref[...], attn,
                      preferred_element_type=jnp.float32)             # (C, L) f32
        o_ref[...] = out + bout_ref[...] + x_ref[...]                 # + residual

    return kernel


# ---------------------------------------------------------------------------
# Forward wrapper: NCHW in, NCHW out (no transposes anywhere)
# ---------------------------------------------------------------------------
def spatial_transformer(prepared, x_nchw, num_heads=NUM_HEADS):
    B, C, H, W = x_nchw.shape
    L = H * W
    hd = C // num_heads
    x3 = x_nchw.reshape(B, C, L).astype(jnp.float32)      # free view of NCHW

    out3 = pl.pallas_call(
        _fused_kernel(num_heads, hd, L, LN_EPS),
        out_shape=jax.ShapeDtypeStruct((B, C, L), jnp.float32),
        grid=(B,),
        in_specs=[
            pl.BlockSpec((None, C, L), lambda b: (b, 0, 0)),   # x, batch squeezed
            pl.BlockSpec((3 * C, C), lambda b: (0, 0)),        # W_qkv^T (bf16)
            pl.BlockSpec((3 * C, 1), lambda b: (0, 0)),        # b_qkv (f32)
            pl.BlockSpec((C, C), lambda b: (0, 0)),            # W_out^T (bf16)
            pl.BlockSpec((C, 1), lambda b: (0, 0)),            # b_out (f32)
        ],
        out_specs=pl.BlockSpec((None, C, L), lambda b: (b, 0, 0)),
        scratch_shapes=[
            pltpu.VMEM((3 * num_heads, hd, L), jnp.bfloat16),  # qkv (transposed)
            pltpu.VMEM((num_heads, hd, L), jnp.bfloat16),      # attention output
        ],
        compiler_params=pltpu.CompilerParams(
            dimension_semantics=("parallel",)),
    )(x3, prepared["wqkvT"], prepared["bqkv"],
      prepared["woutT"], prepared["bout"])
    return out3.reshape(B, C, H, W)


# ---------------------------------------------------------------------------
# One-time parameter preparation: fold LN affine + attention scale into the
# QKV projection, pre-transpose for left-multiplication, pre-cast to bf16.
# ---------------------------------------------------------------------------
def prepare_params(params, num_heads=NUM_HEADS):
    C = params["ln_g"].shape[0]
    hd = C // num_heads
    scale = 1.0 / math.sqrt(hd)
    w_in = params["w_in"].astype(jnp.float32)              # (C, 3C), x @ W conv.
    b_in = params["b_in"].astype(jnp.float32)              # (3C,)
    # layernorm(x)*g+b then @W  ==  x_hat @ (g[:,None]*W) + (b @ W + b_in)
    w_eff = params["ln_g"][:, None] * w_in                  # (C, 3C)
    b_eff = params["ln_b"] @ w_in + b_in                    # (3C,)
    # Fold the 1/sqrt(head_dim) attention scale into the Q columns.
    col_scale = jnp.concatenate([jnp.full((C,), scale, jnp.float32),
                                 jnp.ones((2 * C,), jnp.float32)])
    w_eff = w_eff * col_scale[None, :]
    b_eff = b_eff * col_scale
    return dict(
        wqkvT=w_eff.T.astype(jnp.bfloat16),                 # (3C, C)
        bqkv=b_eff.reshape(3 * C, 1).astype(jnp.float32),   # (3C, 1)
        woutT=params["w_out"].T.astype(jnp.bfloat16),       # (C, C)
        bout=params["b_out"].reshape(C, 1).astype(jnp.float32),
    )


# ---------------------------------------------------------------------------
# Deterministic synthetic parameters (PyTorch-style semantics, x @ W layout)
# ---------------------------------------------------------------------------
def make_params(key, channels):
    k1, k2, k3, k4 = jax.random.split(key, 4)
    s = 1.0 / math.sqrt(channels)
    return dict(
        ln_g=jnp.ones((channels,), jnp.float32),
        ln_b=jnp.zeros((channels,), jnp.float32),
        w_in=jax.random.normal(k1, (channels, 3 * channels), jnp.float32) * s,
        b_in=jax.random.normal(k2, (3 * channels,), jnp.float32) * 0.02,
        w_out=jax.random.normal(k3, (channels, channels), jnp.float32) * s,
        b_out=jax.random.normal(k4, (channels,), jnp.float32) * 0.02,
    )


# ---------------------------------------------------------------------------
# Pure-JAX reference (mirrors the PyTorch module) for a sanity check
# ---------------------------------------------------------------------------
def reference(params, x_nchw, num_heads=NUM_HEADS, eps=LN_EPS):
    B, C, H, W = x_nchw.shape
    L = H * W
    hd = C // num_heads
    x_r = jnp.transpose(x_nchw.reshape(B, C, L), (0, 2, 1))      # (B, L, C)
    mu = jnp.mean(x_r, -1, keepdims=True)
    var = jnp.mean((x_r - mu) ** 2, -1, keepdims=True)
    xn = (x_r - mu) / jnp.sqrt(var + eps) * params["ln_g"] + params["ln_b"]
    qkv = xn @ params["w_in"] + params["b_in"]
    q, k, v = jnp.split(qkv, 3, axis=-1)
    outs = []
    for h in range(num_heads):
        sl = slice(h * hd, (h + 1) * hd)
        s = (q[..., sl] / math.sqrt(hd)) @ jnp.swapaxes(k[..., sl], -1, -2)
        p = jax.nn.softmax(s, axis=-1)
        outs.append(p @ v[..., sl])
    attn = jnp.concatenate(outs, axis=-1)
    out = attn @ params["w_out"] + params["b_out"] + x_r
    return jnp.transpose(out, (0, 2, 1)).reshape(B, C, H, W)


# ---------------------------------------------------------------------------
if __name__ == "__main__":
    # batch=2, channels=128 (4 heads x head_dim 32), spatial 16x16 -> L = 256.
    B, C, H, W = 2, 128, 16, 16

    root = jax.random.PRNGKey(0)
    kp, kx = jax.random.split(root)
    params = make_params(kp, C)
    prepared = prepare_params(params)
    x = jax.random.normal(kx, (B, C, H, W), jnp.float32)

    fwd = jax.jit(lambda pp, xx: spatial_transformer(pp, xx))
    out = jax.block_until_ready(fwd(prepared, x))

    assert out.shape == (B, C, H, W), out.shape
    assert out.dtype == jnp.float32
    assert bool(jnp.all(jnp.isfinite(out)))

    ref = reference(params, x)
    max_err = float(jnp.max(jnp.abs(out - ref)))
    assert max_err < 0.1, f"max abs error vs reference: {max_err}"

    print("KERNEL_OK")
</pallas_src>

<mosaic_0001>
module attributes {stable_mosaic.version = 11 : i64} {
  func.func @kernel(%arg0: i32, %arg1: memref<1x128x256xf32, #tpu.memory_space<vmem>>, %arg2: memref<384x128xbf16, #tpu.memory_space<vmem>>, %arg3: memref<384x1xf32, #tpu.memory_space<vmem>>, %arg4: memref<128x128xbf16, #tpu.memory_space<vmem>>, %arg5: memref<128x1xf32, #tpu.memory_space<vmem>>, %arg6: memref<1x128x256xf32, #tpu.memory_space<vmem>>, %arg7: memref<12x32x256xbf16, #tpu.memory_space<vmem>>, %arg8: memref<4x32x256xbf16, #tpu.memory_space<vmem>>) attributes {dimension_semantics = [#tpu.dimension_semantics<parallel>], iteration_bounds = array<i64: 2>, scalar_prefetch = 0 : i64, scratch_operands = 2 : i64, tpu.core_type = #tpu.core_type<tc>, window_params = [{transform_indices = @transform_0, window_bounds = array<i64: 1, 128, 256>}, {pipeline_mode = #tpu.pipeline_mode<synchronous>, transform_indices = @transform_1, window_bounds = array<i64: 384, 128>}, {pipeline_mode = #tpu.pipeline_mode<synchronous>, transform_indices = @transform_2, window_bounds = array<i64: 384, 1>}, {pipeline_mode = #tpu.pipeline_mode<synchronous>, transform_indices = @transform_3, window_bounds = array<i64: 128, 128>}, {pipeline_mode = #tpu.pipeline_mode<synchronous>, transform_indices = @transform_4, window_bounds = array<i64: 128, 1>}, {transform_indices = @transform_5, window_bounds = array<i64: 1, 128, 256>}]} {
    %c0 = arith.constant 0 : index
    %c0_0 = arith.constant 0 : index
    %c0_1 = arith.constant 0 : index
    %0 = vector.load %arg1[%c0, %c0_0, %c0_1] : memref<1x128x256xf32, #tpu.memory_space<vmem>>, vector<1x128x256xf32>
    %1 = vector.shape_cast %0 : vector<1x128x256xf32> to vector<128x256xf32>
    %cst = arith.constant dense<0.000000e+00> : vector<256xf32>
    %2 = vector.multi_reduction <add>, %1, %cst [0] : vector<128x256xf32> to vector<256xf32>
    %3 = vector.shape_cast %2 : vector<256xf32> to vector<1x256xf32>
    %cst_2 = arith.constant 1.280000e+02 : f32
    %4 = vector.broadcast %cst_2 : f32 to vector<1x256xf32>
    %5 = arith.divf %3, %4 : vector<1x256xf32>
    %6 = vector.broadcast %5 : vector<1x256xf32> to vector<128x256xf32>
    %7 = arith.subf %1, %6 : vector<128x256xf32>
    %8 = arith.mulf %7, %7 : vector<128x256xf32>
    %cst_3 = arith.constant dense<0.000000e+00> : vector<256xf32>
    %9 = vector.multi_reduction <add>, %8, %cst_3 [0] : vector<128x256xf32> to vector<256xf32>
    %10 = vector.shape_cast %9 : vector<256xf32> to vector<1x256xf32>
    %cst_4 = arith.constant 1.280000e+02 : f32
    %11 = vector.broadcast %cst_4 : f32 to vector<1x256xf32>
    %12 = arith.divf %10, %11 : vector<1x256xf32>
    %cst_5 = arith.constant 9.99999974E-6 : f32
    %13 = vector.broadcast %cst_5 : f32 to vector<1x256xf32>
    %14 = arith.addf %12, %13 : vector<1x256xf32>
    %15 = math.rsqrt %14 : vector<1x256xf32>
    %16 = vector.broadcast %15 : vector<1x256xf32> to vector<128x256xf32>
    %17 = arith.mulf %7, %16 : vector<128x256xf32>
    %18 = arith.truncf %17 : vector<128x256xf32> to vector<128x256xbf16>
    %c0_6 = arith.constant 0 : index
    %c0_7 = arith.constant 0 : index
    %19 = vector.load %arg2[%c0_6, %c0_7] : memref<384x128xbf16, #tpu.memory_space<vmem>>, vector<384x128xbf16>
    %cst_8 = arith.constant dense<0.000000e+00> : vector<384x256xf32>
    %20 = tpu.matmul %19, %18, %cst_8 {dimension_numbers = #tpu.dot_dimension_numbers<[1], [0], [0], [1], [0, 0, 1, 1], [], []>} : vector<384x128xbf16>, vector<128x256xbf16>, vector<384x256xf32> -> vector<384x256xf32>
    %c0_9 = arith.constant 0 : index
    %c0_10 = arith.constant 0 : index
    %21 = vector.load %arg3[%c0_9, %c0_10] : memref<384x1xf32, #tpu.memory_space<vmem>>, vector<384x1xf32>
    %22 = vector.broadcast %21 : vector<384x1xf32> to vector<384x256xf32>
    %23 = arith.addf %20, %22 : vector<384x256xf32>
    %24 = arith.truncf %23 : vector<384x256xf32> to vector<384x256xbf16>
    %25 = vector.shape_cast %24 : vector<384x256xbf16> to vector<12x32x256xbf16>
    %c0_11 = arith.constant 0 : index
    %c0_12 = arith.constant 0 : index
    %c0_13 = arith.constant 0 : index
    %26 = vector.load %arg7[%c0_11, %c0_12, %c0_13] : memref<12x32x256xbf16, #tpu.memory_space<vmem>>, vector<12x32x256xbf16>
    tpu.vector_store %arg7[%c0_11, %c0_12, %c0_13], %25 {strides = array<i32>} : memref<12x32x256xbf16, #tpu.memory_space<vmem>>, vector<12x32x256xbf16>,
    %c0_i32 = arith.constant 0 : i32
    %c4_i32 = arith.constant 4 : i32
    %27 = arith.addi %c0_i32, %c4_i32 : i32
    %c1_i32 = arith.constant 1 : i32
    scf.for %arg9 = %c0_i32 to %27 step %c1_i32  : i32 {
      %41 = arith.index_cast %arg9 : i32 to index
      %c0_29 = arith.constant 0 : index
      %c0_30 = arith.constant 0 : index
      %42 = vector.load %arg7[%41, %c0_29, %c0_30] : memref<12x32x256xbf16, #tpu.memory_space<vmem>>, vector<1x32x256xbf16>
      %43 = vector.shape_cast %42 : vector<1x32x256xbf16> to vector<32x256xbf16>
      %c4_i32_31 = arith.constant 4 : i32
      %44 = arith.addi %c4_i32_31, %arg9 : i32
      %45 = arith.index_cast %44 : i32 to index
      %c0_32 = arith.constant 0 : index
      %c0_33 = arith.constant 0 : index
      %46 = vector.load %arg7[%45, %c0_32, %c0_33] : memref<12x32x256xbf16, #tpu.memory_space<vmem>>, vector<1x32x256xbf16>
      %47 = vector.shape_cast %46 : vector<1x32x256xbf16> to vector<32x256xbf16>
      %c8_i32 = arith.constant 8 : i32
      %48 = arith.addi %c8_i32, %arg9 : i32
      %49 = arith.index_cast %48 : i32 to index
      %c0_34 = arith.constant 0 : index
      %c0_35 = arith.constant 0 : index
      %50 = vector.load %arg7[%49, %c0_34, %c0_35] : memref<12x32x256xbf16, #tpu.memory_space<vmem>>, vector<1x32x256xbf16>
      %51 = vector.shape_cast %50 : vector<1x32x256xbf16> to vector<32x256xbf16>
      %cst_36 = arith.constant dense<0.000000e+00> : vector<256x256xf32>
      %52 = tpu.matmul %47, %43, %cst_36 {dimension_numbers = #tpu.dot_dimension_numbers<[0], [0], [1], [1], [0, 1, 1, 1], [], []>} : vector<32x256xbf16>, vector<32x256xbf16>, vector<256x256xf32> -> vector<256x256xf32>
      %cst_37 = arith.constant dense<0xFF800000> : vector<256xf32>
      %53 = vector.multi_reduction <maximumf>, %52, %cst_37 [0] : vector<256x256xf32> to vector<256xf32>
      %54 = vector.shape_cast %53 : vector<256xf32> to vector<1x256xf32>
      %55 = vector.broadcast %54 : vector<1x256xf32> to vector<256x256xf32>
      %56 = arith.subf %52, %55 : vector<256x256xf32>
      %57 = math.exp %56 : vector<256x256xf32>
      %cst_38 = arith.constant dense<0.000000e+00> : vector<256xf32>
      %58 = vector.multi_reduction <add>, %57, %cst_38 [0] : vector<256x256xf32> to vector<256xf32>
      %59 = vector.shape_cast %58 : vector<256xf32> to vector<1x256xf32>
      %60 = arith.truncf %57 : vector<256x256xf32> to vector<256x256xbf16>
      %cst_39 = arith.constant dense<0.000000e+00> : vector<32x256xf32>
      %61 = tpu.matmul %51, %60, %cst_39 {dimension_numbers = #tpu.dot_dimension_numbers<[1], [0], [0], [1], [0, 0, 1, 1], [], []>} : vector<32x256xbf16>, vector<256x256xbf16>, vector<32x256xf32> -> vector<32x256xf32>
      %62 = tpu.reciprocal %59 : vector<1x256xf32> -> vector<1x256xf32>
      %63 = vector.broadcast %62 : vector<1x256xf32> to vector<32x256xf32>
      %64 = arith.mulf %61, %63 : vector<32x256xf32>
      %65 = arith.truncf %64 : vector<32x256xf32> to vector<32x256xbf16>
      %66 = arith.index_cast %arg9 : i32 to index
      %c0_40 = arith.constant 0 : index
      %c0_41 = arith.constant 0 : index
      %67 = vector.load %arg8[%66, %c0_40, %c0_41] : memref<4x32x256xbf16, #tpu.memory_space<vmem>>, vector<1x32x256xbf16>
      %68 = vector.shape_cast %67 : vector<1x32x256xbf16> to vector<32x256xbf16>
      %69 = vector.shape_cast %65 : vector<32x256xbf16> to vector<1x32x256xbf16>
      tpu.vector_store %arg8[%66, %c0_40, %c0_41], %69 {strides = array<i32>} : memref<4x32x256xbf16, #tpu.memory_space<vmem>>, vector<1x32x256xbf16>,
    }
    %c4_i32_14 = arith.constant 4 : i32
    %c0_15 = arith.constant 0 : index
    %c0_16 = arith.constant 0 : index
    %c0_17 = arith.constant 0 : index
    %28 = vector.load %arg8[%c0_15, %c0_16, %c0_17] : memref<4x32x256xbf16, #tpu.memory_space<vmem>>, vector<4x32x256xbf16>
    %29 = vector.shape_cast %28 : vector<4x32x256xbf16> to vector<128x256xbf16>
    %c0_18 = arith.constant 0 : index
    %c0_19 = arith.constant 0 : index
    %30 = vector.load %arg4[%c0_18, %c0_19] : memref<128x128xbf16, #tpu.memory_space<vmem>>, vector<128x128xbf16>
    %cst_20 = arith.constant dense<0.000000e+00> : vector<128x256xf32>
    %31 = tpu.matmul %30, %29, %cst_20 {dimension_numbers = #tpu.dot_dimension_numbers<[1], [0], [0], [1], [0, 0, 1, 1], [], []>} : vector<128x128xbf16>, vector<128x256xbf16>, vector<128x256xf32> -> vector<128x256xf32>
    %c0_21 = arith.constant 0 : index
    %c0_22 = arith.constant 0 : index
    %32 = vector.load %arg5[%c0_21, %c0_22] : memref<128x1xf32, #tpu.memory_space<vmem>>, vector<128x1xf32>
    %33 = vector.broadcast %32 : vector<128x1xf32> to vector<128x256xf32>
    %34 = arith.addf %31, %33 : vector<128x256xf32>
    %c0_23 = arith.constant 0 : index
    %c0_24 = arith.constant 0 : index
    %c0_25 = arith.constant 0 : index
    %35 = vector.load %arg1[%c0_23, %c0_24, %c0_25] : memref<1x128x256xf32, #tpu.memory_space<vmem>>, vector<1x128x256xf32>
    %36 = vector.shape_cast %35 : vector<1x128x256xf32> to vector<128x256xf32>
    %37 = arith.addf %34, %36 : vector<128x256xf32>
    %c0_26 = arith.constant 0 : index
    %c0_27 = arith.constant 0 : index
    %c0_28 = arith.constant 0 : index
    %38 = vector.load %arg6[%c0_26, %c0_27, %c0_28] : memref<1x128x256xf32, #tpu.memory_space<vmem>>, vector<1x128x256xf32>
    %39 = vector.shape_cast %38 : vector<1x128x256xf32> to vector<128x256xf32>
    %40 = vector.shape_cast %37 : vector<128x256xf32> to vector<1x128x256xf32>
    tpu.vector_store %arg6[%c0_26, %c0_27, %c0_28], %40 {strides = array<i32>} : memref<1x128x256xf32, #tpu.memory_space<vmem>>, vector<1x128x256xf32>,
    return
  }
  func.func @transform_0(%arg0: i32) -> (i32, i32, i32) {
    %c0_i32 = arith.constant 0 : i32
    %c0_i32_0 = arith.constant 0 : i32
    %c0_i32_1 = arith.constant 0 : i32
    return %arg0, %c0_i32, %c0_i32_0 : i32, i32, i32
  }
  func.func @transform_1(%arg0: i32) -> (i32, i32) {
    %c0_i32 = arith.constant 0 : i32
    %c0_i32_0 = arith.constant 0 : i32
    %c0_i32_1 = arith.constant 0 : i32
    return %c0_i32, %c0_i32_0 : i32, i32
  }
  func.func @transform_2(%arg0: i32) -> (i32, i32) {
    %c0_i32 = arith.constant 0 : i32
    %c0_i32_0 = arith.constant 0 : i32
    %c0_i32_1 = arith.constant 0 : i32
    return %c0_i32, %c0_i32_0 : i32, i32
  }
  func.func @transform_3(%arg0: i32) -> (i32, i32) {
    %c0_i32 = arith.constant 0 : i32
    %c0_i32_0 = arith.constant 0 : i32
    %c0_i32_1 = arith.constant 0 : i32
    return %c0_i32, %c0_i32_0 : i32, i32
  }
  func.func @transform_4(%arg0: i32) -> (i32, i32) {
    %c0_i32 = arith.constant 0 : i32
    %c0_i32_0 = arith.constant 0 : i32
    %c0_i32_1 = arith.constant 0 : i32
    return %c0_i32, %c0_i32_0 : i32, i32
  }
  func.func @transform_5(%arg0: i32) -> (i32, i32, i32) {
    %c0_i32 = arith.constant 0 : i32
    %c0_i32_0 = arith.constant 0 : i32
    %c0_i32_1 = arith.constant 0 : i32
    return %arg0, %c0_i32, %c0_i32_0 : i32, i32, i32
  }
}

</mosaic_0001>

<llo_original>
// kernel: _lambda_.1
$region0: #{_lambda_.1}
  #allocation0 [shape = 'u32[]', space=smem, size = 0x4, offset = 0x4, fixed_abs, tag = 'smem constant byte address 0x4 - core index']
  #allocation1 [shape = 'u32[144,128]{1,0:T(1,128)}', space=vmem, size = 0x12000, scoped, tag = 'internal scratch']
  #allocation2 [shape = 'bf16[12,32,256]{2,1,0:T(8,128)(2,1)}', space=vmem, size = 0x30000, scoped, tag = 'scratch operand']
  #allocation3 [shape = 'bf16[4,32,256]{2,1,0:T(8,128)(2,1)}', space=vmem, size = 0x10000, scoped, tag = 'scratch operand']
  %s0 = inlined_call_operand.vmem [shape: f32[2,128,256], index: 0, kind: input, shape index: {}]
  %s1 = inlined_call_operand.vmem [shape: bf16[384,128], index: 1, kind: input, shape index: {}]
  %s2 = inlined_call_operand.vmem [shape: f32[384,1], index: 2, kind: input, shape index: {}]
  %s3 = inlined_call_operand.vmem [shape: bf16[128,128], index: 3, kind: input, shape index: {}]
  %s4 = inlined_call_operand.vmem [shape: f32[128,1], index: 4, kind: input, shape index: {}]
  %s5 = inlined_call_operand.vmem [shape: f32[2,128,256], index: 5, kind: output, shape index: {}]
  %s6 = sld [smem:[#allocation0]]
  $region60: #{_lambda_.1} parent=0
    _
  %s8 = ssub.s32 1, %s6
  %s9 = scalar_select 0, %s8, %s6
  loop: start=0, step=1, limit=4
  $region2: #{_lambda_.1} parent=0 // loop_pre_header
    _
  $region3: #{_lambda_.1} parent=0 // loop_header
    %s11 = sphi 0, %s15
    %p12 = scmp.ge.s32.totalorder %s11, 4
    %s21 = sphi 0, %s23
    %s24 = sphi 0, %s21
    %s25 = sphi 0, %s24
    %s41 = sphi 0, %s25
    %s45 = sphi 0, %s45
    %s47 = sphi 0, %s45
    %s48 = sphi 0, %s47
    %s62 = sphi 0, %s48
    %s66 = sphi 0, %s66
    %s68 = sphi 0, %s66
    %s69 = sphi 0, %s68
    %s83 = sphi 0, %s69
    %s87 = sphi 0, %s87
    %s89 = sphi 0, %s87
    %s90 = sphi 0, %s89
    %s104 = sphi 0, %s90
    %s108 = sphi 0, %s108
    %s110 = sphi 0, %s108
    %s111 = sphi 0, %s110
    %s125 = sphi 0, %s111
    %s131 = sphi 0, %s133
    %s134 = sphi 0, %s131
    %s135 = sphi 0, %s134
    %s151 = sphi 0, %s135
  $region4: #{_lambda_.1} parent=0 // loop_header_branch
    %14 = sbr.rel (%p12) target = $region8
  $region5: #{_lambda_.1} parent=0 // loop_body
    %s16 = ssub.s32 %s11, 1
    %s17 = ssub.s32 %s11, 2
    %s18 = sadd.s32 %s11, 1
    %s19 = ssub.s32 %s11, %s18
    %p20 = scmp.eq.s32.totalorder %s19, 0
    %s22 = sadd.s32 %s21, 1
    %s23 = scalar_select %p20, %s21, %s22
    %p26 = pneg %p20
    %p27 = scmp.eq.s32.totalorder %s11, 1
    %p28 = por %p26, %p27
    %p29 = scmp.ne.s32.totalorder %s21, %s24
    %p30 = scmp.eq.s32.totalorder %s11, 0
    %p31 = por %p29, %p30
    %p32 = scmp.ne.s32.totalorder %s21, %s24
    %p33 = scmp.eq.s32.totalorder %s16, 1
    %p34 = por %p32, %p33
    %p35 = scmp.ne.s32.totalorder %s24, %s25
    %p36 = scmp.eq.s32.totalorder %s16, 0
    %p37 = por %p35, %p36
    %p38 = scmp.ne.s32.totalorder %s24, %s25
    %p39 = scmp.eq.s32.totalorder %s17, 1
    %p40 = por %p38, %p39
    %p42 = scmp.ne.s32.totalorder %s25, %s41
    %p43 = scmp.eq.s32.totalorder %s17, 0
    %p44 = por %p42, %p43
    %s46 = sadd.s32 %s45, 1
    %p49 = scmp.eq.s32.totalorder %s11, 1
    %p50 = scmp.ne.s32.totalorder %s45, %s47
    %p51 = scmp.eq.s32.totalorder %s11, 0
    %p52 = por %p50, %p51
    %p53 = scmp.ne.s32.totalorder %s45, %s47
    %p54 = scmp.eq.s32.totalorder %s16, 1
    %p55 = por %p53, %p54
    %p56 = scmp.ne.s32.totalorder %s47, %s48
    %p57 = scmp.eq.s32.totalorder %s16, 0
    %p58 = por %p56, %p57
    %p59 = scmp.ne.s32.totalorder %s47, %s48
    %p60 = scmp.eq.s32.totalorder %s17, 1
    %p61 = por %p59, %p60
    %p63 = scmp.ne.s32.totalorder %s48, %s62
    %p64 = scmp.eq.s32.totalorder %s17, 0
    %p65 = por %p63, %p64
    %s67 = sadd.s32 %s66, 1
    %p70 = scmp.eq.s32.totalorder %s11, 1
    %p71 = scmp.ne.s32.totalorder %s66, %s68
    %p72 = scmp.eq.s32.totalorder %s11, 0
    %p73 = por %p71, %p72
    %p74 = scmp.ne.s32.totalorder %s66, %s68
    %p75 = scmp.eq.s32.totalorder %s16, 1
    %p76 = por %p74, %p75
    %p77 = scmp.ne.s32.totalorder %s68, %s69
    %p78 = scmp.eq.s32.totalorder %s16, 0
    %p79 = por %p77, %p78
    %p80 = scmp.ne.s32.totalorder %s68, %s69
    %p81 = scmp.eq.s32.totalorder %s17, 1
    %p82 = por %p80, %p81
    %p84 = scmp.ne.s32.totalorder %s69, %s83
    %p85 = scmp.eq.s32.totalorder %s17, 0
    %p86 = por %p84, %p85
    %s88 = sadd.s32 %s87, 1
    %p91 = scmp.eq.s32.totalorder %s11, 1
    %p92 = scmp.ne.s32.totalorder %s87, %s89
    %p93 = scmp.eq.s32.totalorder %s11, 0
    %p94 = por %p92, %p93
    %p95 = scmp.ne.s32.totalorder %s87, %s89
    %p96 = scmp.eq.s32.totalorder %s16, 1
    %p97 = por %p95, %p96
    %p98 = scmp.ne.s32.totalorder %s89, %s90
    %p99 = scmp.eq.s32.totalorder %s16, 0
    %p100 = por %p98, %p99
    %p101 = scmp.ne.s32.totalorder %s89, %s90
    %p102 = scmp.eq.s32.totalorder %s17, 1
    %p103 = por %p101, %p102
    %p105 = scmp.ne.s32.totalorder %s90, %s104
    %p106 = scmp.eq.s32.totalorder %s17, 0
    %p107 = por %p105, %p106
    %s109 = sadd.s32 %s108, 1
    %p112 = scmp.eq.s32.totalorder %s11, 1
    %p113 = scmp.ne.s32.totalorder %s108, %s110
    %p114 = scmp.eq.s32.totalorder %s11, 0
    %p115 = por %p113, %p114
    %p116 = scmp.ne.s32.totalorder %s108, %s110
    %p117 = scmp.eq.s32.totalorder %s16, 1
    %p118 = por %p116, %p117
    %p119 = scmp.ne.s32.totalorder %s110, %s111
    %p120 = scmp.eq.s32.totalorder %s16, 0
    %p121 = por %p119, %p120
    %p122 = scmp.ne.s32.totalorder %s110, %s111
    %p123 = scmp.eq.s32.totalorder %s17, 1
    %p124 = por %p122, %p123
    %p126 = scmp.ne.s32.totalorder %s111, %s125
    %p127 = scmp.eq.s32.totalorder %s17, 0
    %p128 = por %p126, %p127
    %s129 = ssub.s32 %s11, %s18
    %p130 = scmp.eq.s32.totalorder %s129, 0
    %s132 = sadd.s32 %s131, 1
    %s133 = scalar_select %p130, %s131, %s132
    %p136 = pneg %p130
    %p137 = scmp.eq.s32.totalorder %s11, 1
    %p138 = por %p136, %p137
    %p139 = scmp.ne.s32.totalorder %s131, %s134
    %p140 = scmp.eq.s32.totalorder %s11, 0
    %p141 = por %p139, %p140
    %p142 = scmp.ne.s32.totalorder %s131, %s134
    %p143 = scmp.eq.s32.totalorder %s16, 1
    %p144 = por %p142, %p143
    %p145 = scmp.ne.s32.totalorder %s134, %s135
    %p146 = scmp.eq.s32.totalorder %s16, 0
    %p147 = por %p145, %p146
    %p148 = scmp.ne.s32.totalorder %s134, %s135
    %p149 = scmp.eq.s32.totalorder %s17, 1
    %p150 = por %p148, %p149
    %p152 = scmp.ne.s32.totalorder %s135, %s151
    %p153 = scmp.eq.s32.totalorder %s17, 0
    %p154 = por %p152, %p153
    %p155 = scmp.le.s32.totalorder 1, %s11
    %p156 = scmp.lt.s32.totalorder %s11, 3
    %p157 = pnand %p155, %p156
    %p158 = pneg %p157
    // Predicated region
    $region9: #{_lambda_.1} parent=5 // pred_check
      _
    $region10: #{_lambda_.1} parent=5 // pred_check_branch
      %160 = sbr.rel (%p157) target = $region12
    $region11: #{_lambda_.1} parent=5 // pred_region
      %s161 = ssub.s32 %s11, 1
      // Predicated region
      $region13: #{_lambda_.1} parent=11 // pred_check
        %p162 = pneg %p58
      $region14: #{_lambda_.1} parent=11 // pred_check_branch
        %164 = sbr.rel (%p162) target = $region16
      $region15: #{_lambda_.1} parent=11 // pred_region
        _
      $region16: #{_lambda_.1} parent=11 // pred_fallthru
        _
      // Predicated region
      $region17: #{_lambda_.1} parent=11 // pred_check
        %p165 = pneg %p79
      $region18: #{_lambda_.1} parent=11 // pred_check_branch
        %167 = sbr.rel (%p165) target = $region20
      $region19: #{_lambda_.1} parent=11 // pred_region
        _
      $region20: #{_lambda_.1} parent=11 // pred_fallthru
        _
      // Predicated region
      $region21: #{_lambda_.1} parent=11 // pred_check
        %p168 = pneg %p100
      $region22: #{_lambda_.1} parent=11 // pred_check_branch
        %170 = sbr.rel (%p168) target = $region24
      $region23: #{_lambda_.1} parent=11 // pred_region
        _
      $region24: #{_lambda_.1} parent=11 // pred_fallthru
        _
      // Predicated region
      $region25: #{_lambda_.1} parent=11 // pred_check
        %p171 = pneg %p121
      $region26: #{_lambda_.1} parent=11 // pred_check_branch
        %173 = sbr.rel (%p171) target = $region28
      $region27: #{_lambda_.1} parent=11 // pred_region
        _
      $region28: #{_lambda_.1} parent=11 // pred_fallthru
        _
    $region12: #{_lambda_.1} parent=5 // pred_fallthru
      _
    %p174 = scmp.lt.s32.totalorder %s11, 2
    // Predicated region
    $region29: #{_lambda_.1} parent=5 // pred_check
      %p175 = pneg %p174
    $region30: #{_lambda_.1} parent=5 // pred_check_branch
      %177 = sbr.rel (%p175) target = $region32
    $region31: #{_lambda_.1} parent=5 // pred_region
      // Predicated region
      $region33: #{_lambda_.1} parent=31 // pred_check
        %p178 = pneg %p31
      $region34: #{_lambda_.1} parent=31 // pred_check_branch
        %180 = sbr.rel (%p178) target = $region36
      $region35: #{_lambda_.1} parent=31 // pred_region
        %p181 = scmp.lt.s32.totalorder %s11, 1
        %s182 = scalar_select %p181, %s11, 1
        %s183 = smul.addr %s182, 32
        %s184 = smul.addr %s183, 8
        %s185 = scalar_lea.vmem %s0, %s184
      $region36: #{_lambda_.1} parent=31 // pred_fallthru
        _
    $region32: #{_lambda_.1} parent=5 // pred_fallthru
      _
    %p186 = scmp.le.s32.totalorder 1, %s11
    %p187 = scmp.lt.s32.totalorder %s11, 3
    %p188 = pnand %p186, %p187
    %p189 = pneg %p188
    // Predicated region
    $region37: #{_lambda_.1} parent=5 // pred_check
      _
    $region38: #{_lambda_.1} parent=5 // pred_check_branch
      %191 = sbr.rel (%p188) target = $region40
    $region39: #{_lambda_.1} parent=5 // pred_region
      %s192 = ssub.s32 %s11, 1
      %p193 = scmp.lt.s32.totalorder %s16, 1
      %s194 = scalar_select %p193, %s16, 1
      %s195 = smul.addr %s194, 32
      %s196 = smul.addr %s195, 8
      %s197 = scalar_lea.vmem %s0, %s196
      %p198 = pneg %p37
      %p199 = pneg %p34
      %p200 = pneg %p58
      %p201 = pneg %p55
      %p202 = pneg %p79
      %p203 = pneg %p76
      %p204 = pneg %p100
      %p205 = pneg %p97
      %p206 = pneg %p121
      %p207 = pneg %p118
      %p208 = pneg %p147
      %p209 = pneg %p144
      %p210 = scmp.lt.s32.totalorder %s16, 1
      %s211 = scalar_select %p210, %s16, 1
      %s212 = smul.addr %s211, 32
      %s213 = smul.addr %s212, 8
      %s214 = scalar_lea.vmem %s5, %s213
      %p215 = scmp.lt.s32.totalorder %s16, 1
      %s216 = scalar_select %p215, %s16, 1
      %s217 = smul.addr %s216, 32
      %s218 = smul.addr %s217, 8
      %s219 = scalar_lea.vmem %s0, %s218
      %p220 = scmp.lt.s32.totalorder %s16, 1
      %s221 = scalar_select %p220, %s16, 1
      %s222 = smul.addr %s221, 32
      %s223 = smul.addr %s222, 8
      %s224 = scalar_lea.vmem %s5, %s223
      %v226 = vld [vmem:[%s219] sm:$0xff]
      %v227 = vld [vmem:[%s219 + $0x8] sm:$0xff]
      %v228 = vld [vmem:[%s219 + $0x10] sm:$0xff]
      %v229 = vld [vmem:[%s219 + $0x18] sm:$0xff]
      %v230 = vld [vmem:[%s219 + $0x20] sm:$0xff]
      %v231 = vld [vmem:[%s219 + $0x28] sm:$0xff]
      %v232 = vld [vmem:[%s219 + $0x30] sm:$0xff]
      %v233 = vld [vmem:[%s219 + $0x38] sm:$0xff]
      %v234 = vld [vmem:[%s219 + $0x40] sm:$0xff]
      %v235 = vld [vmem:[%s219 + $0x48] sm:$0xff]
      %v236 = vld [vmem:[%s219 + $0x50] sm:$0xff]
      %v237 = vld [vmem:[%s219 + $0x58] sm:$0xff]
      %v238 = vld [vmem:[%s219 + $0x60] sm:$0xff]
      %v239 = vld [vmem:[%s219 + $0x68] sm:$0xff]
      %v240 = vld [vmem:[%s219 + $0x70] sm:$0xff]
      %v241 = vld [vmem:[%s219 + $0x78] sm:$0xff]
      %v242 = vld [vmem:[%s219 + $0x80] sm:$0xff]
      %v243 = vld [vmem:[%s219 + $0x88] sm:$0xff]
      %v244 = vld [vmem:[%s219 + $0x90] sm:$0xff]
      %v245 = vld [vmem:[%s219 + $0x98] sm:$0xff]
      %v246 = vld [vmem:[%s219 + $0xa0] sm:$0xff]
      %v247 = vld [vmem:[%s219 + $0xa8] sm:$0xff]
      %v248 = vld [vmem:[%s219 + $0xb0] sm:$0xff]
      %v249 = vld [vmem:[%s219 + $0xb8] sm:$0xff]
      %v250 = vld [vmem:[%s219 + $0xc0] sm:$0xff]
      %v251 = vld [vmem:[%s219 + $0xc8] sm:$0xff]
      %v252 = vld [vmem:[%s219 + $0xd0] sm:$0xff]
      %v253 = vld [vmem:[%s219 + $0xd8] sm:$0xff]
      %v254 = vld [vmem:[%s219 + $0xe0] sm:$0xff]
      %v255 = vld [vmem:[%s219 + $0xe8] sm:$0xff]
      %v256 = vld [vmem:[%s219 + $0xf0] sm:$0xff]
      %v257 = vld [vmem:[%s219 + $0xf8] sm:$0xff]
      %v258 = vadd.f32 %v226, %v228
      %v259 = vadd.f32 %v258, %v230
      %v260 = vadd.f32 %v259, %v232
      %v261 = vadd.f32 %v260, %v234
      %v262 = vadd.f32 %v261, %v236
      %v263 = vadd.f32 %v262, %v238
      %v264 = vadd.f32 %v263, %v240
      %v265 = vadd.f32 %v264, %v242
      %v266 = vadd.f32 %v265, %v244
      %v267 = vadd.f32 %v266, %v246
      %v268 = vadd.f32 %v267, %v248
      %v269 = vadd.f32 %v268, %v250
      %v270 = vadd.f32 %v269, %v252
      %v271 = vadd.f32 %v270, %v254
      %v272 = vadd.f32 %v271, %v256
      %v273 = vrot.slane %v272, 4
      %v274 = vadd.f32 %v272, %v273
      %v275 = vrot.slane %v274, 2
      %v276 = vadd.f32 %v274, %v275
      %v277 = vrot.slane %v276, 1
      %v278 = vadd.f32 %v276, %v277
      %v279 = vadd.f32 %v227, %v229
      %v280 = vadd.f32 %v279, %v231
      %v281 = vadd.f32 %v280, %v233
      %v282 = vadd.f32 %v281, %v235
      %v283 = vadd.f32 %v282, %v237
      %v284 = vadd.f32 %v283, %v239
      %v285 = vadd.f32 %v284, %v241
      %v286 = vadd.f32 %v285, %v243
      %v287 = vadd.f32 %v286, %v245
      %v288 = vadd.f32 %v287, %v247
      %v289 = vadd.f32 %v288, %v249
      %v290 = vadd.f32 %v289, %v251
      %v291 = vadd.f32 %v290, %v253
      %v292 = vadd.f32 %v291, %v255
      %v293 = vadd.f32 %v292, %v257
      %v294 = vrot.slane %v293, 4
      %v295 = vadd.f32 %v293, %v294
      %v296 = vrot.slane %v295, 2
      %v297 = vadd.f32 %v295, %v296
      %v298 = vrot.slane %v297, 1
      %v299 = vadd.f32 %v297, %v298
      %v300 = vrcp.pop 128.0
      %v301 = vmul.f32 %v278, %v300
      %v302 = vmul.f32 %v299, %v300
      %v303 = vsub.f32 %v226, %v301
      %v304 = vsub.f32 %v227, %v302
      %v305 = vsub.f32 %v228, %v301
      %v306 = vsub.f32 %v229, %v302
      %v307 = vsub.f32 %v230, %v301
      %v308 = vsub.f32 %v231, %v302
      %v309 = vsub.f32 %v232, %v301
      %v310 = vsub.f32 %v233, %v302
      %v311 = vsub.f32 %v234, %v301
      %v312 = vsub.f32 %v235, %v302
      %v313 = vsub.f32 %v236, %v301
      %v314 = vsub.f32 %v237, %v302
      %v315 = vsub.f32 %v238, %v301
      %v316 = vsub.f32 %v239, %v302
      %v317 = vsub.f32 %v240, %v301
      %v318 = vsub.f32 %v241, %v302
      %v319 = vsub.f32 %v242, %v301
      %v320 = vsub.f32 %v243, %v302
      %v321 = vsub.f32 %v244, %v301
      %v322 = vsub.f32 %v245, %v302
      %v323 = vsub.f32 %v246, %v301
      %v324 = vsub.f32 %v247, %v302
      %v325 = vsub.f32 %v248, %v301
      %v326 = vsub.f32 %v249, %v302
      %v327 = vsub.f32 %v250, %v301
      %v328 = vsub.f32 %v251, %v302
      %v329 = vsub.f32 %v252, %v301
      %v330 = vsub.f32 %v253, %v302
      %v331 = vsub.f32 %v254, %v301
      %v332 = vsub.f32 %v255, %v302
      %v333 = vsub.f32 %v256, %v301
      %v334 = vsub.f32 %v257, %v302
      %v335 = vmul.f32 %v303, %v303
      %v336 = vmul.f32 %v304, %v304
      %v337 = vmul.f32 %v305, %v305
      %v338 = vmul.f32 %v306, %v306
      %v339 = vmul.f32 %v307, %v307
      %v340 = vmul.f32 %v308, %v308
      %v341 = vmul.f32 %v309, %v309
      %v342 = vmul.f32 %v310, %v310
      %v343 = vmul.f32 %v311, %v311
      %v344 = vmul.f32 %v312, %v312
      %v345 = vmul.f32 %v313, %v313
      %v346 = vmul.f32 %v314, %v314
      %v347 = vmul.f32 %v315, %v315
      %v348 = vmul.f32 %v316, %v316
      %v349 = vmul.f32 %v317, %v317
      %v350 = vmul.f32 %v318, %v318
      %v351 = vmul.f32 %v319, %v319
      %v352 = vmul.f32 %v320, %v320
      %v353 = vmul.f32 %v321, %v321
      %v354 = vmul.f32 %v322, %v322
      %v355 = vmul.f32 %v323, %v323
      %v356 = vmul.f32 %v324, %v324
      %v357 = vmul.f32 %v325, %v325
      %v358 = vmul.f32 %v326, %v326
      %v359 = vmul.f32 %v327, %v327
      %v360 = vmul.f32 %v328, %v328
      %v361 = vmul.f32 %v329, %v329
      %v362 = vmul.f32 %v330, %v330
      %v363 = vmul.f32 %v331, %v331
      %v364 = vmul.f32 %v332, %v332
      %v365 = vmul.f32 %v333, %v333
      %v366 = vmul.f32 %v334, %v334
      %v367 = vadd.f32 %v335, %v337
      %v368 = vadd.f32 %v367, %v339
      %v369 = vadd.f32 %v368, %v341
      %v370 = vadd.f32 %v369, %v343
      %v371 = vadd.f32 %v370, %v345
      %v372 = vadd.f32 %v371, %v347
      %v373 = vadd.f32 %v372, %v349
      %v374 = vadd.f32 %v373, %v351
      %v375 = vadd.f32 %v374, %v353
      %v376 = vadd.f32 %v375, %v355
      %v377 = vadd.f32 %v376, %v357
      %v378 = vadd.f32 %v377, %v359
      %v379 = vadd.f32 %v378, %v361
      %v380 = vadd.f32 %v379, %v363
      %v381 = vadd.f32 %v380, %v365
      %v382 = vrot.slane %v381, 4
      %v383 = vadd.f32 %v381, %v382
      %v384 = vrot.slane %v383, 2
      %v385 = vadd.f32 %v383, %v384
      %v386 = vrot.slane %v385, 1
      %v387 = vadd.f32 %v385, %v386
      %v388 = vadd.f32 %v336, %v338
      %v389 = vadd.f32 %v388, %v340
      %v390 = vadd.f32 %v389, %v342
      %v391 = vadd.f32 %v390, %v344
      %v392 = vadd.f32 %v391, %v346
      %v393 = vadd.f32 %v392, %v348
      %v394 = vadd.f32 %v393, %v350
      %v395 = vadd.f32 %v394, %v352
      %v396 = vadd.f32 %v395, %v354
      %v397 = vadd.f32 %v396, %v356
      %v398 = vadd.f32 %v397, %v358
      %v399 = vadd.f32 %v398, %v360
      %v400 = vadd.f32 %v399, %v362
      %v401 = vadd.f32 %v400, %v364
      %v402 = vadd.f32 %v401, %v366
      %v403 = vrot.slane %v402, 4
      %v404 = vadd.f32 %v402, %v403
      %v405 = vrot.slane %v404, 2
      %v406 = vadd.f32 %v404, %v405
      %v407 = vrot.slane %v406, 1
      %v408 = vadd.f32 %v406, %v407
      %v409 = vmul.f32 %v387, %v300
      %v410 = vmul.f32 %v408, %v300
      %v411 = vadd.f32 %v409, 1e-05
      %v412 = vadd.f32 %v410, 1e-05
      %v413 = vrsqrt.pop %v411
      %v414 = vrsqrt.pop %v412
      %v415 = vmul.f32 %v303, %v413
      %v416 = vmul.f32 %v304, %v414
      %v417 = vmul.f32 %v305, %v413
      %v418 = vmul.f32 %v306, %v414
      %v419 = vmul.f32 %v307, %v413
      %v420 = vmul.f32 %v308, %v414
      %v421 = vmul.f32 %v309, %v413
      %v422 = vmul.f32 %v310, %v414
      %v423 = vmul.f32 %v311, %v413
      %v424 = vmul.f32 %v312, %v414
      %v425 = vmul.f32 %v313, %v413
      %v426 = vmul.f32 %v314, %v414
      %v427 = vmul.f32 %v315, %v413
      %v428 = vmul.f32 %v316, %v414
      %v429 = vmul.f32 %v317, %v413
      %v430 = vmul.f32 %v318, %v414
      %v431 = vmul.f32 %v319, %v413
      %v432 = vmul.f32 %v320, %v414
      %v433 = vmul.f32 %v321, %v413
      %v434 = vmul.f32 %v322, %v414
      %v435 = vmul.f32 %v323, %v413
      %v436 = vmul.f32 %v324, %v414
      %v437 = vmul.f32 %v325, %v413
      %v438 = vmul.f32 %v326, %v414
      %v439 = vmul.f32 %v327, %v413
      %v440 = vmul.f32 %v328, %v414
      %v441 = vmul.f32 %v329, %v413
      %v442 = vmul.f32 %v330, %v414
      %v443 = vmul.f32 %v331, %v413
      %v444 = vmul.f32 %v332, %v414
      %v445 = vmul.f32 %v333, %v413
      %v446 = vmul.f32 %v334, %v414
      %v447 = vpack.c.bf16 %v417, %v415
      %v448 = vpack.c.bf16 %v418, %v416
      %v449 = vpack.c.bf16 %v421, %v419
      %v450 = vpack.c.bf16 %v422, %v420
      %v451 = vpack.c.bf16 %v425, %v423
      %v452 = vpack.c.bf16 %v426, %v424
      %v453 = vpack.c.bf16 %v429, %v427
      %v454 = vpack.c.bf16 %v430, %v428
      %v455 = vpack.c.bf16 %v433, %v431
      %v456 = vpack.c.bf16 %v434, %v432
      %v457 = vpack.c.bf16 %v437, %v435
      %v458 = vpack.c.bf16 %v438, %v436
      %v459 = vpack.c.bf16 %v441, %v439
      %v460 = vpack.c.bf16 %v442, %v440
      %v461 = vpack.c.bf16 %v445, %v443
      %v462 = vpack.c.bf16 %v446, %v444
      %v463 = vld [vmem:[%s1] sm:$0xf]
      %v464 = vld [vmem:[%s1 + $0x4] sm:$0xf]
      %v465 = vld [vmem:[%s1 + $0x8] sm:$0xf]
      %v466 = vld [vmem:[%s1 + $0xc] sm:$0xf]
      %v467 = vld [vmem:[%s1 + $0x10] sm:$0xf]
      %v468 = vld [vmem:[%s1 + $0x14] sm:$0xf]
      %v469 = vld [vmem:[%s1 + $0x18] sm:$0xf]
      %v470 = vld [vmem:[%s1 + $0x1c] sm:$0xf]
      %v471 = vld [vmem:[%s1 + $0x20] sm:$0xf]
      %v472 = vld [vmem:[%s1 + $0x24] sm:$0xf]
      %v473 = vld [vmem:[%s1 + $0x28] sm:$0xf]
      %v474 = vld [vmem:[%s1 + $0x2c] sm:$0xf]
      %v475 = vld [vmem:[%s1 + $0x30] sm:$0xf]
      %v476 = vld [vmem:[%s1 + $0x34] sm:$0xf]
      %v477 = vld [vmem:[%s1 + $0x38] sm:$0xf]
      %v478 = vld [vmem:[%s1 + $0x3c] sm:$0xf]
      %v479 = vld [vmem:[%s1 + $0x40] sm:$0xf]
      %v480 = vld [vmem:[%s1 + $0x44] sm:$0xf]
      %v481 = vld [vmem:[%s1 + $0x48] sm:$0xf]
      %v482 = vld [vmem:[%s1 + $0x4c] sm:$0xf]
      %v483 = vld [vmem:[%s1 + $0x50] sm:$0xf]
      %v484 = vld [vmem:[%s1 + $0x54] sm:$0xf]
      %v485 = vld [vmem:[%s1 + $0x58] sm:$0xf]
      %v486 = vld [vmem:[%s1 + $0x5c] sm:$0xf]
      %v487 = vld [vmem:[%s1 + $0x60] sm:$0xf]
      %v488 = vld [vmem:[%s1 + $0x64] sm:$0xf]
      %v489 = vld [vmem:[%s1 + $0x68] sm:$0xf]
      %v490 = vld [vmem:[%s1 + $0x6c] sm:$0xf]
      %v491 = vld [vmem:[%s1 + $0x70] sm:$0xf]
      %v492 = vld [vmem:[%s1 + $0x74] sm:$0xf]
      %v493 = vld [vmem:[%s1 + $0x78] sm:$0xf]
      %v494 = vld [vmem:[%s1 + $0x7c] sm:$0xf]
      %v495 = vld [vmem:[%s1 + $0x80] sm:$0xf]
      %v496 = vld [vmem:[%s1 + $0x84] sm:$0xf]
      %v497 = vld [vmem:[%s1 + $0x88] sm:$0xf]
      %v498 = vld [vmem:[%s1 + $0x8c] sm:$0xf]
      %v499 = vld [vmem:[%s1 + $0x90] sm:$0xf]
      %v500 = vld [vmem:[%s1 + $0x94] sm:$0xf]
      %v501 = vld [vmem:[%s1 + $0x98] sm:$0xf]
      %v502 = vld [vmem:[%s1 + $0x9c] sm:$0xf]
      %v503 = vld [vmem:[%s1 + $0xa0] sm:$0xf]
      %v504 = vld [vmem:[%s1 + $0xa4] sm:$0xf]
      %v505 = vld [vmem:[%s1 + $0xa8] sm:$0xf]
      %v506 = vld [vmem:[%s1 + $0xac] sm:$0xf]
      %v507 = vld [vmem:[%s1 + $0xb0] sm:$0xf]
      %v508 = vld [vmem:[%s1 + $0xb4] sm:$0xf]
      %v509 = vld [vmem:[%s1 + $0xb8] sm:$0xf]
      %v510 = vld [vmem:[%s1 + $0xbc] sm:$0xf]
      %v511 = vld [vmem:[%s2] sm:$0xff]
      %v512 = vld [vmem:[%s2 + $0x8] sm:$0xff]
      %v513 = vld [vmem:[%s2 + $0x10] sm:$0xff]
      %v514 = vld [vmem:[%s2 + $0x18] sm:$0xff]
      %v515 = vld [vmem:[%s2 + $0x20] sm:$0xff]
      %v516 = vld [vmem:[%s2 + $0x28] sm:$0xff]
      %v517 = vld [vmem:[%s2 + $0x30] sm:$0xff]
      %v518 = vld [vmem:[%s2 + $0x38] sm:$0xff]
      %v519 = vld [vmem:[%s2 + $0x40] sm:$0xff]
      %v520 = vld [vmem:[%s2 + $0x48] sm:$0xff]
      %v521 = vld [vmem:[%s2 + $0x50] sm:$0xff]
      %v522 = vld [vmem:[%s2 + $0x58] sm:$0xff]
      %v523 = vld [vmem:[%s2 + $0x60] sm:$0xff]
      %v524 = vld [vmem:[%s2 + $0x68] sm:$0xff]
      %v525 = vld [vmem:[%s2 + $0x70] sm:$0xff]
      %v526 = vld [vmem:[%s2 + $0x78] sm:$0xff]
      %v527 = vld [vmem:[%s2 + $0x80] sm:$0xff]
      %v528 = vld [vmem:[%s2 + $0x88] sm:$0xff]
      %v529 = vld [vmem:[%s2 + $0x90] sm:$0xff]
      %v530 = vld [vmem:[%s2 + $0x98] sm:$0xff]
      %v531 = vld [vmem:[%s2 + $0xa0] sm:$0xff]
      %v532 = vld [vmem:[%s2 + $0xa8] sm:$0xff]
      %v533 = vld [vmem:[%s2 + $0xb0] sm:$0xff]
      %v534 = vld [vmem:[%s2 + $0xb8] sm:$0xff]
      %v535 = vld [vmem:[%s2 + $0xc0] sm:$0xff]
      %v536 = vld [vmem:[%s2 + $0xc8] sm:$0xff]
      %v537 = vld [vmem:[%s2 + $0xd0] sm:$0xff]
      %v538 = vld [vmem:[%s2 + $0xd8] sm:$0xff]
      %v539 = vld [vmem:[%s2 + $0xe0] sm:$0xff]
      %v540 = vld [vmem:[%s2 + $0xe8] sm:$0xff]
      %v541 = vld [vmem:[%s2 + $0xf0] sm:$0xff]
      %v542 = vld [vmem:[%s2 + $0xf8] sm:$0xff]
      %v543 = vld [vmem:[%s2 + $0x100] sm:$0xff]
      %v544 = vld [vmem:[%s2 + $0x108] sm:$0xff]
      %v545 = vld [vmem:[%s2 + $0x110] sm:$0xff]
      %v546 = vld [vmem:[%s2 + $0x118] sm:$0xff]
      %v547 = vld [vmem:[%s2 + $0x120] sm:$0xff]
      %v548 = vld [vmem:[%s2 + $0x128] sm:$0xff]
      %v549 = vld [vmem:[%s2 + $0x130] sm:$0xff]
      %v550 = vld [vmem:[%s2 + $0x138] sm:$0xff]
      %v551 = vld [vmem:[%s2 + $0x140] sm:$0xff]
      %v552 = vld [vmem:[%s2 + $0x148] sm:$0xff]
      %v553 = vld [vmem:[%s2 + $0x150] sm:$0xff]
      %v554 = vld [vmem:[%s2 + $0x158] sm:$0xff]
      %v555 = vld [vmem:[%s2 + $0x160] sm:$0xff]
      %v556 = vld [vmem:[%s2 + $0x168] sm:$0xff]
      %v557 = vld [vmem:[%s2 + $0x170] sm:$0xff]
      %v558 = vld [vmem:[%s2 + $0x178] sm:$0xff]
      %560 = vset.pattern.permute.xlu0 0
      %561 = vperm.xlu0 %560, %v511
      %v562 = vpop.permute.xlu0 %561
      %565 = vset.pattern.permute.xlu0 0
      %566 = vperm.xlu0 %565, %v512
      %v567 = vpop.permute.xlu0 %566
      %570 = vset.pattern.permute.xlu0 0
      %571 = vperm.xlu0 %570, %v513
      %v572 = vpop.permute.xlu0 %571
      %575 = vset.pattern.permute.xlu0 0
      %576 = vperm.xlu0 %575, %v514
      %v577 = vpop.permute.xlu0 %576
      %580 = vset.pattern.permute.xlu0 0
      %581 = vperm.xlu0 %580, %v515
      %v582 = vpop.permute.xlu0 %581
      %585 = vset.pattern.permute.xlu0 0
      %586 = vperm.xlu0 %585, %v516
      %v587 = vpop.permute.xlu0 %586
      %590 = vset.pattern.permute.xlu0 0
      %591 = vperm.xlu0 %590, %v517
      %v592 = vpop.permute.xlu0 %591
      %595 = vset.pattern.permute.xlu0 0
      %596 = vperm.xlu0 %595, %v518
      %v597 = vpop.permute.xlu0 %596
      %600 = vset.pattern.permute.xlu0 0
      %601 = vperm.xlu0 %600, %v519
      %v602 = vpop.permute.xlu0 %601
      %605 = vset.pattern.permute.xlu0 0
      %606 = vperm.xlu0 %605, %v520
      %v607 = vpop.permute.xlu0 %606
      %610 = vset.pattern.permute.xlu0 0
      %611 = vperm.xlu0 %610, %v521
      %v612 = vpop.permute.xlu0 %611
      %615 = vset.pattern.permute.xlu0 0
      %616 = vperm.xlu0 %615, %v522
      %v617 = vpop.permute.xlu0 %616
      %620 = vset.pattern.permute.xlu0 0
      %621 = vperm.xlu0 %620, %v523
      %v622 = vpop.permute.xlu0 %621
      %625 = vset.pattern.permute.xlu0 0
      %626 = vperm.xlu0 %625, %v524
      %v627 = vpop.permute.xlu0 %626
      %630 = vset.pattern.permute.xlu0 0
      %631 = vperm.xlu0 %630, %v525
      %v632 = vpop.permute.xlu0 %631
      %635 = vset.pattern.permute.xlu0 0
      %636 = vperm.xlu0 %635, %v526
      %v637 = vpop.permute.xlu0 %636
      %640 = vset.pattern.permute.xlu0 0
      %641 = vperm.xlu0 %640, %v527
      %v642 = vpop.permute.xlu0 %641
      %645 = vset.pattern.permute.xlu0 0
      %646 = vperm.xlu0 %645, %v528
      %v647 = vpop.permute.xlu0 %646
      %650 = vset.pattern.permute.xlu0 0
      %651 = vperm.xlu0 %650, %v529
      %v652 = vpop.permute.xlu0 %651
      %655 = vset.pattern.permute.xlu0 0
      %656 = vperm.xlu0 %655, %v530
      %v657 = vpop.permute.xlu0 %656
      %660 = vset.pattern.permute.xlu0 0
      %661 = vperm.xlu0 %660, %v531
      %v662 = vpop.permute.xlu0 %661
      %665 = vset.pattern.permute.xlu0 0
      %666 = vperm.xlu0 %665, %v532
      %v667 = vpop.permute.xlu0 %666
      %670 = vset.pattern.permute.xlu0 0
      %671 = vperm.xlu0 %670, %v533
      %v672 = vpop.permute.xlu0 %671
      %675 = vset.pattern.permute.xlu0 0
      %676 = vperm.xlu0 %675, %v534
      %v677 = vpop.permute.xlu0 %676
      %680 = vset.pattern.permute.xlu0 0
      %681 = vperm.xlu0 %680, %v535
      %v682 = vpop.permute.xlu0 %681
      %685 = vset.pattern.permute.xlu0 0
      %686 = vperm.xlu0 %685, %v536
      %v687 = vpop.permute.xlu0 %686
      %690 = vset.pattern.permute.xlu0 0
      %691 = vperm.xlu0 %690, %v537
      %v692 = vpop.permute.xlu0 %691
      %695 = vset.pattern.permute.xlu0 0
      %696 = vperm.xlu0 %695, %v538
      %v697 = vpop.permute.xlu0 %696
      %700 = vset.pattern.permute.xlu0 0
      %701 = vperm.xlu0 %700, %v539
      %v702 = vpop.permute.xlu0 %701
      %705 = vset.pattern.permute.xlu0 0
      %706 = vperm.xlu0 %705, %v540
      %v707 = vpop.permute.xlu0 %706
      %710 = vset.pattern.permute.xlu0 0
      %711 = vperm.xlu0 %710, %v541
      %v712 = vpop.permute.xlu0 %711
      %715 = vset.pattern.permute.xlu0 0
      %716 = vperm.xlu0 %715, %v542
      %v717 = vpop.permute.xlu0 %716
      %720 = vset.pattern.permute.xlu0 0
      %721 = vperm.xlu0 %720, %v543
      %v722 = vpop.permute.xlu0 %721
      %725 = vset.pattern.permute.xlu0 0
      %726 = vperm.xlu0 %725, %v544
      %v727 = vpop.permute.xlu0 %726
      %730 = vset.pattern.permute.xlu0 0
      %731 = vperm.xlu0 %730, %v545
      %v732 = vpop.permute.xlu0 %731
      %735 = vset.pattern.permute.xlu0 0
      %736 = vperm.xlu0 %735, %v546
      %v737 = vpop.permute.xlu0 %736
      %740 = vset.pattern.permute.xlu0 0
      %741 = vperm.xlu0 %740, %v547
      %v742 = vpop.permute.xlu0 %741
      %745 = vset.pattern.permute.xlu0 0
      %746 = vperm.xlu0 %745, %v548
      %v747 = vpop.permute.xlu0 %746
      %750 = vset.pattern.permute.xlu0 0
      %751 = vperm.xlu0 %750, %v549
      %v752 = vpop.permute.xlu0 %751
      %755 = vset.pattern.permute.xlu0 0
      %756 = vperm.xlu0 %755, %v550
      %v757 = vpop.permute.xlu0 %756
      %760 = vset.pattern.permute.xlu0 0
      %761 = vperm.xlu0 %760, %v551
      %v762 = vpop.permute.xlu0 %761
      %765 = vset.pattern.permute.xlu0 0
      %766 = vperm.xlu0 %765, %v552
      %v767 = vpop.permute.xlu0 %766
      %770 = vset.pattern.permute.xlu0 0
      %771 = vperm.xlu0 %770, %v553
      %v772 = vpop.permute.xlu0 %771
      %775 = vset.pattern.permute.xlu0 0
      %776 = vperm.xlu0 %775, %v554
      %v777 = vpop.permute.xlu0 %776
      %780 = vset.pattern.permute.xlu0 0
      %781 = vperm.xlu0 %780, %v555
      %v782 = vpop.permute.xlu0 %781
      %785 = vset.pattern.permute.xlu0 0
      %786 = vperm.xlu0 %785, %v556
      %v787 = vpop.permute.xlu0 %786
      %790 = vset.pattern.permute.xlu0 0
      %791 = vperm.xlu0 %790, %v557
      %v792 = vpop.permute.xlu0 %791
      %795 = vset.pattern.permute.xlu0 0
      %796 = vperm.xlu0 %795, %v558
      %v797 = vpop.permute.xlu0 %796
      %v847 = vunpack.c.l.b16 %v463
      %v848 = vunpack.c.l.b16 %v464
      %v849 = vunpack.c.l.b16 %v465
      %v850 = vunpack.c.l.b16 %v466
      %v851 = vunpack.c.l.b16 %v467
      %v852 = vunpack.c.l.b16 %v468
      %v853 = vunpack.c.l.b16 %v469
      %v854 = vunpack.c.l.b16 %v470
      %v855 = vunpack.c.l.b16 %v471
      %v856 = vunpack.c.l.b16 %v472
      %v857 = vunpack.c.l.b16 %v473
      %v858 = vunpack.c.l.b16 %v474
      %v859 = vunpack.c.l.b16 %v475
      %v860 = vunpack.c.l.b16 %v476
      %v861 = vunpack.c.l.b16 %v477
      %v862 = vunpack.c.l.b16 %v478
      %v863 = vunpack.c.l.b16 %v479
      %v864 = vunpack.c.l.b16 %v480
      %v865 = vunpack.c.l.b16 %v481
      %v866 = vunpack.c.l.b16 %v482
      %v867 = vunpack.c.l.b16 %v483
      %v868 = vunpack.c.l.b16 %v484
      %v869 = vunpack.c.l.b16 %v485
      %v870 = vunpack.c.l.b16 %v486
      %v871 = vunpack.c.l.b16 %v487
      %v872 = vunpack.c.l.b16 %v488
      %v873 = vunpack.c.l.b16 %v489
      %v874 = vunpack.c.l.b16 %v490
      %v875 = vunpack.c.l.b16 %v491
      %v876 = vunpack.c.l.b16 %v492
      %v877 = vunpack.c.l.b16 %v493
      %v878 = vunpack.c.l.b16 %v494
      %v879 = vunpack.c.l.b16 %v495
      %v880 = vunpack.c.l.b16 %v496
      %v881 = vunpack.c.l.b16 %v497
      %v882 = vunpack.c.l.b16 %v498
      %v883 = vunpack.c.l.b16 %v499
      %v884 = vunpack.c.l.b16 %v500
      %v885 = vunpack.c.l.b16 %v501
      %v886 = vunpack.c.l.b16 %v502
      %v887 = vunpack.c.l.b16 %v503
      %v888 = vunpack.c.l.b16 %v504
      %v889 = vunpack.c.l.b16 %v505
      %v890 = vunpack.c.l.b16 %v506
      %v891 = vunpack.c.l.b16 %v507
      %v892 = vunpack.c.l.b16 %v508
      %v893 = vunpack.c.l.b16 %v509
      %v894 = vunpack.c.l.b16 %v510
      %v895 = vpack.c.b16 %v848, %v847
      %v896 = vpack.c.b16 %v850, %v849
      %v897 = vpack.c.b16 %v852, %v851
      %v898 = vpack.c.b16 %v854, %v853
      %v899 = vpack.c.b16 %v856, %v855
      %v900 = vpack.c.b16 %v858, %v857
      %v901 = vpack.c.b16 %v860, %v859
      %v902 = vpack.c.b16 %v862, %v861
      %v903 = vpack.c.b16 %v864, %v863
      %v904 = vpack.c.b16 %v866, %v865
      %v905 = vpack.c.b16 %v868, %v867
      %v906 = vpack.c.b16 %v870, %v869
      %v907 = vpack.c.b16 %v872, %v871
      %v908 = vpack.c.b16 %v874, %v873
      %v909 = vpack.c.b16 %v876, %v875
      %v910 = vpack.c.b16 %v878, %v877
      %v911 = vpack.c.b16 %v880, %v879
      %v912 = vpack.c.b16 %v882, %v881
      %v913 = vpack.c.b16 %v884, %v883
      %v914 = vpack.c.b16 %v886, %v885
      %v915 = vpack.c.b16 %v888, %v887
      %v916 = vpack.c.b16 %v890, %v889
      %v917 = vpack.c.b16 %v892, %v891
      %v918 = vpack.c.b16 %v894, %v893
      %943 = vmatprep.subr.bf16.mxu0 %v462
      %944 = vmatpush1.bf16.msra.mxu0 %v461
      %945 = vmatprep.subr.bf16.mxu0 %v460
      %946 = vmatpush1.bf16.msra.mxu0 %v459
      %947 = vmatprep.subr.bf16.mxu0 %v458
      %948 = vmatpush1.bf16.msra.mxu0 %v457
      %949 = vmatprep.subr.bf16.mxu0 %v456
      %950 = vmatpush1.bf16.msra.mxu0 %v455
      %951 = vmatprep.subr.bf16.mxu0 %v454
      %952 = vmatpush1.bf16.msra.mxu0 %v453
      %953 = vmatprep.subr.bf16.mxu0 %v452
      %954 = vmatpush1.bf16.msra.mxu0 %v451
      %955 = vmatprep.subr.bf16.mxu0 %v450
      %956 = vmatpush1.bf16.msra.mxu0 %v449
      %957 = vmatprep.subr.bf16.mxu0 %v448
      %958 = vmatpush1.bf16.msra.mxu0 %v447
      %959 = vmatprep.subr.bf16.mxu0 0
      %960 = vmatpush2.bf16.msra.mxu0 0
      %961 = vmatprep.subr.bf16.mxu0 0
      %962 = vmatpush2.bf16.msra.mxu0 0
      %963 = vmatprep.subr.bf16.mxu0 0
      %964 = vmatpush2.bf16.msra.mxu0 0
      %965 = vmatprep.subr.bf16.mxu0 0
      %966 = vmatpush2.bf16.msra.mxu0 0
      %967 = vmatprep.subr.bf16.mxu0 0
      %968 = vmatpush2.bf16.msra.mxu0 0
      %969 = vmatprep.subr.bf16.mxu0 0
      %970 = vmatpush2.bf16.msra.mxu0 0
      %971 = vmatprep.subr.bf16.mxu0 0
      %972 = vmatpush2.bf16.msra.mxu0 0
      %973 = vmatprep.subr.bf16.mxu0 0
      %974 = vmatpush2.bf16.msra.mxu0 0
      %975 = vmatprep.mubr.bf16.mxu0 0
      %976 = vmatmul.mubr.bf16.gmra.mxu0 %v895
      %v977 = vpop.f32.mrf.mxu0
      %v978 = vadd.f32 %v562, %v977
      %v979 = vpop.f32.mrf.mxu0
      %v980 = vadd.f32 %v562, %v979
      %v981 = vpop.f32.mrf.mxu0
      %v982 = vadd.f32 %v567, %v981
      %v983 = vpop.f32.mrf.mxu0
      %v984 = vadd.f32 %v567, %v983
      %985 = vmatprep.mubr.bf16.mxu0 0
      %986 = vmatmul.mubr.bf16.gmra.mxu0 %v896
      %v987 = vpop.f32.mrf.mxu0
      %v988 = vadd.f32 %v572, %v987
      %v989 = vpop.f32.mrf.mxu0
      %v990 = vadd.f32 %v572, %v989
      %v991 = vpop.f32.mrf.mxu0
      %v992 = vadd.f32 %v577, %v991
      %v993 = vpop.f32.mrf.mxu0
      %v994 = vadd.f32 %v577, %v993
      %995 = vmatprep.mubr.bf16.mxu0 0
      %996 = vmatmul.mubr.bf16.gmra.mxu0 %v897
      %v997 = vpop.f32.mrf.mxu0
      %v998 = vadd.f32 %v582, %v997
      %v999 = vpop.f32.mrf.mxu0
      %v1000 = vadd.f32 %v582, %v999
      %v1001 = vpop.f32.mrf.mxu0
      %v1002 = vadd.f32 %v587, %v1001
      %v1003 = vpop.f32.mrf.mxu0
      %v1004 = vadd.f32 %v587, %v1003
      %1005 = vmatprep.mubr.bf16.mxu0 0
      %1006 = vmatmul.mubr.bf16.gmra.mxu0 %v898
      %v1007 = vpop.f32.mrf.mxu0
      %v1008 = vadd.f32 %v592, %v1007
      %v1009 = vpop.f32.mrf.mxu0
      %v1010 = vadd.f32 %v592, %v1009
      %v1011 = vpop.f32.mrf.mxu0
      %v1012 = vadd.f32 %v597, %v1011
      %v1013 = vpop.f32.mrf.mxu0
      %v1014 = vadd.f32 %v597, %v1013
      %1015 = vmatprep.mubr.bf16.mxu0 0
      %1016 = vmatmul.mubr.bf16.gmra.mxu0 %v899
      %v1017 = vpop.f32.mrf.mxu0
      %v1018 = vadd.f32 %v602, %v1017
      %v1019 = vpop.f32.mrf.mxu0
      %v1020 = vadd.f32 %v602, %v1019
      %v1021 = vpop.f32.mrf.mxu0
      %v1022 = vadd.f32 %v607, %v1021
      %v1023 = vpop.f32.mrf.mxu0
      %v1024 = vadd.f32 %v607, %v1023
      %1025 = vmatprep.mubr.bf16.mxu0 0
      %1026 = vmatmul.mubr.bf16.gmra.mxu0 %v900
      %v1027 = vpop.f32.mrf.mxu0
      %v1028 = vadd.f32 %v612, %v1027
      %v1029 = vpop.f32.mrf.mxu0
      %v1030 = vadd.f32 %v612, %v1029
      %v1031 = vpop.f32.mrf.mxu0
      %v1032 = vadd.f32 %v617, %v1031
      %v1033 = vpop.f32.mrf.mxu0
      %v1034 = vadd.f32 %v617, %v1033
      %1035 = vmatprep.mubr.bf16.mxu0 0
      %1036 = vmatmul.mubr.bf16.gmra.mxu0 %v901
      %v1037 = vpop.f32.mrf.mxu0
      %v1038 = vadd.f32 %v622, %v1037
      %v1039 = vpop.f32.mrf.mxu0
      %v1040 = vadd.f32 %v622, %v1039
      %v1041 = vpop.f32.mrf.mxu0
      %v1042 = vadd.f32 %v627, %v1041
      %v1043 = vpop.f32.mrf.mxu0
      %v1044 = vadd.f32 %v627, %v1043
      %1045 = vmatprep.mubr.bf16.mxu0 0
      %1046 = vmatmul.mubr.bf16.gmra.mxu0 %v902
      %v1047 = vpop.f32.mrf.mxu0
      %v1048 = vadd.f32 %v632, %v1047
      %v1049 = vpop.f32.mrf.mxu0
      %v1050 = vadd.f32 %v632, %v1049
      %v1051 = vpop.f32.mrf.mxu0
      %v1052 = vadd.f32 %v637, %v1051
      %v1053 = vpop.f32.mrf.mxu0
      %v1054 = vadd.f32 %v637, %v1053
      %1055 = vmatprep.mubr.bf16.mxu0 0
      %1056 = vmatmul.mubr.bf16.gmra.mxu0 %v903
      %v1057 = vpop.f32.mrf.mxu0
      %v1058 = vadd.f32 %v642, %v1057
      %v1059 = vpop.f32.mrf.mxu0
      %v1060 = vadd.f32 %v642, %v1059
      %v1061 = vpop.f32.mrf.mxu0
      %v1062 = vadd.f32 %v647, %v1061
      %v1063 = vpop.f32.mrf.mxu0
      %v1064 = vadd.f32 %v647, %v1063
      %1065 = vmatprep.mubr.bf16.mxu0 0
      %1066 = vmatmul.mubr.bf16.gmra.mxu0 %v904
      %v1067 = vpop.f32.mrf.mxu0
      %v1068 = vadd.f32 %v652, %v1067
      %v1069 = vpop.f32.mrf.mxu0
      %v1070 = vadd.f32 %v652, %v1069
      %v1071 = vpop.f32.mrf.mxu0
      %v1072 = vadd.f32 %v657, %v1071
      %v1073 = vpop.f32.mrf.mxu0
      %v1074 = vadd.f32 %v657, %v1073
      %1075 = vmatprep.mubr.bf16.mxu0 0
      %1076 = vmatmul.mubr.bf16.gmra.mxu0 %v905
      %v1077 = vpop.f32.mrf.mxu0
      %v1078 = vadd.f32 %v662, %v1077
      %v1079 = vpop.f32.mrf.mxu0
      %v1080 = vadd.f32 %v662, %v1079
      %v1081 = vpop.f32.mrf.mxu0
      %v1082 = vadd.f32 %v667, %v1081
      %v1083 = vpop.f32.mrf.mxu0
      %v1084 = vadd.f32 %v667, %v1083
      %1085 = vmatprep.mubr.bf16.mxu0 0
      %1086 = vmatmul.mubr.bf16.gmra.mxu0 %v906
      %v1087 = vpop.f32.mrf.mxu0
      %v1088 = vadd.f32 %v672, %v1087
      %v1089 = vpop.f32.mrf.mxu0
      %v1090 = vadd.f32 %v672, %v1089
      %v1091 = vpop.f32.mrf.mxu0
      %v1092 = vadd.f32 %v677, %v1091
      %v1093 = vpop.f32.mrf.mxu0
      %v1094 = vadd.f32 %v677, %v1093
      %1095 = vmatprep.mubr.bf16.mxu0 0
      %1096 = vmatmul.mubr.bf16.gmra.mxu0 %v907
      %v1097 = vpop.f32.mrf.mxu0
      %v1098 = vadd.f32 %v682, %v1097
      %v1099 = vpop.f32.mrf.mxu0
      %v1100 = vadd.f32 %v682, %v1099
      %v1101 = vpop.f32.mrf.mxu0
      %v1102 = vadd.f32 %v687, %v1101
      %v1103 = vpop.f32.mrf.mxu0
      %v1104 = vadd.f32 %v687, %v1103
      %1105 = vmatprep.mubr.bf16.mxu0 0
      %1106 = vmatmul.mubr.bf16.gmra.mxu0 %v908
      %v1107 = vpop.f32.mrf.mxu0
      %v1108 = vadd.f32 %v692, %v1107
      %v1109 = vpop.f32.mrf.mxu0
      %v1110 = vadd.f32 %v692, %v1109
      %v1111 = vpop.f32.mrf.mxu0
      %v1112 = vadd.f32 %v697, %v1111
      %v1113 = vpop.f32.mrf.mxu0
      %v1114 = vadd.f32 %v697, %v1113
      %1115 = vmatprep.mubr.bf16.mxu0 0
      %1116 = vmatmul.mubr.bf16.gmra.mxu0 %v909
      %v1117 = vpop.f32.mrf.mxu0
      %v1118 = vadd.f32 %v702, %v1117
      %v1119 = vpop.f32.mrf.mxu0
      %v1120 = vadd.f32 %v702, %v1119
      %v1121 = vpop.f32.mrf.mxu0
      %v1122 = vadd.f32 %v707, %v1121
      %v1123 = vpop.f32.mrf.mxu0
      %v1124 = vadd.f32 %v707, %v1123
      %1125 = vmatprep.mubr.bf16.mxu0 0
      %1126 = vmatmul.mubr.bf16.gmra.mxu0 %v910
      %v1127 = vpop.f32.mrf.mxu0
      %v1128 = vadd.f32 %v712, %v1127
      %v1129 = vpop.f32.mrf.mxu0
      %v1130 = vadd.f32 %v712, %v1129
      %v1131 = vpop.f32.mrf.mxu0
      %v1132 = vadd.f32 %v717, %v1131
      %v1133 = vpop.f32.mrf.mxu0
      %v1134 = vadd.f32 %v717, %v1133
      %1135 = vmatprep.mubr.bf16.mxu0 0
      %1136 = vmatmul.mubr.bf16.gmra.mxu0 %v911
      %v1137 = vpop.f32.mrf.mxu0
      %v1138 = vadd.f32 %v722, %v1137
      %v1139 = vpop.f32.mrf.mxu0
      %v1140 = vadd.f32 %v722, %v1139
      %v1141 = vpop.f32.mrf.mxu0
      %v1142 = vadd.f32 %v727, %v1141
      %v1143 = vpop.f32.mrf.mxu0
      %v1144 = vadd.f32 %v727, %v1143
      %1145 = vmatprep.mubr.bf16.mxu0 0
      %1146 = vmatmul.mubr.bf16.gmra.mxu0 %v912
      %v1147 = vpop.f32.mrf.mxu0
      %v1148 = vadd.f32 %v732, %v1147
      %v1149 = vpop.f32.mrf.mxu0
      %v1150 = vadd.f32 %v732, %v1149
      %v1151 = vpop.f32.mrf.mxu0
      %v1152 = vadd.f32 %v737, %v1151
      %v1153 = vpop.f32.mrf.mxu0
      %v1154 = vadd.f32 %v737, %v1153
      %1155 = vmatprep.mubr.bf16.mxu0 0
      %1156 = vmatmul.mubr.bf16.gmra.mxu0 %v913
      %v1157 = vpop.f32.mrf.mxu0
      %v1158 = vadd.f32 %v742, %v1157
      %v1159 = vpop.f32.mrf.mxu0
      %v1160 = vadd.f32 %v742, %v1159
      %v1161 = vpop.f32.mrf.mxu0
      %v1162 = vadd.f32 %v747, %v1161
      %v1163 = vpop.f32.mrf.mxu0
      %v1164 = vadd.f32 %v747, %v1163
      %1165 = vmatprep.mubr.bf16.mxu0 0
      %1166 = vmatmul.mubr.bf16.gmra.mxu0 %v914
      %v1167 = vpop.f32.mrf.mxu0
      %v1168 = vadd.f32 %v752, %v1167
      %v1169 = vpop.f32.mrf.mxu0
      %v1170 = vadd.f32 %v752, %v1169
      %v1171 = vpop.f32.mrf.mxu0
      %v1172 = vadd.f32 %v757, %v1171
      %v1173 = vpop.f32.mrf.mxu0
      %v1174 = vadd.f32 %v757, %v1173
      %1175 = vmatprep.mubr.bf16.mxu0 0
      %1176 = vmatmul.mubr.bf16.gmra.mxu0 %v915
      %v1177 = vpop.f32.mrf.mxu0
      %v1178 = vadd.f32 %v762, %v1177
      %v1179 = vpop.f32.mrf.mxu0
      %v1180 = vadd.f32 %v762, %v1179
      %v1181 = vpop.f32.mrf.mxu0
      %v1182 = vadd.f32 %v767, %v1181
      %v1183 = vpop.f32.mrf.mxu0
      %v1184 = vadd.f32 %v767, %v1183
      %1185 = vmatprep.mubr.bf16.mxu0 0
      %1186 = vmatmul.mubr.bf16.gmra.mxu0 %v916
      %v1187 = vpop.f32.mrf.mxu0
      %v1188 = vadd.f32 %v772, %v1187
      %v1189 = vpop.f32.mrf.mxu0
      %v1190 = vadd.f32 %v772, %v1189
      %v1191 = vpop.f32.mrf.mxu0
      %v1192 = vadd.f32 %v777, %v1191
      %v1193 = vpop.f32.mrf.mxu0
      %v1194 = vadd.f32 %v777, %v1193
      %1195 = vmatprep.mubr.bf16.mxu0 0
      %1196 = vmatmul.mubr.bf16.gmra.mxu0 %v917
      %v1197 = vpop.f32.mrf.mxu0
      %v1198 = vadd.f32 %v782, %v1197
      %v1199 = vpop.f32.mrf.mxu0
      %v1200 = vadd.f32 %v782, %v1199
      %v1201 = vpop.f32.mrf.mxu0
      %v1202 = vadd.f32 %v787, %v1201
      %v1203 = vpop.f32.mrf.mxu0
      %v1204 = vadd.f32 %v787, %v1203
      %1205 = vmatprep.mubr.bf16.mxu0 0
      %1206 = vmatmul.mubr.bf16.gmra.mxu0 %v918
      %v1207 = vpop.f32.mrf.mxu0
      %v1208 = vadd.f32 %v792, %v1207
      %v1209 = vpop.f32.mrf.mxu0
      %v1210 = vadd.f32 %v792, %v1209
      %v1211 = vpop.f32.mrf.mxu0
      %v1212 = vadd.f32 %v797, %v1211
      %v1213 = vpop.f32.mrf.mxu0
      %v1214 = vadd.f32 %v797, %v1213
      %1215 = vdwg.mxu0
      %v1216 = vpack.c.bf16 %v982, %v978
      %v1217 = vpack.c.bf16 %v984, %v980
      %v1218 = vpack.c.bf16 %v992, %v988
      %v1219 = vpack.c.bf16 %v994, %v990
      %v1220 = vpack.c.bf16 %v1002, %v998
      %v1221 = vpack.c.bf16 %v1004, %v1000
      %v1222 = vpack.c.bf16 %v1012, %v1008
      %v1223 = vpack.c.bf16 %v1014, %v1010
      %v1224 = vpack.c.bf16 %v1022, %v1018
      %v1225 = vpack.c.bf16 %v1024, %v1020
      %v1226 = vpack.c.bf16 %v1032, %v1028
      %v1227 = vpack.c.bf16 %v1034, %v1030
      %v1228 = vpack.c.bf16 %v1042, %v1038
      %v1229 = vpack.c.bf16 %v1044, %v1040
      %v1230 = vpack.c.bf16 %v1052, %v1048
      %v1231 = vpack.c.bf16 %v1054, %v1050
      %v1232 = vpack.c.bf16 %v1062, %v1058
      %v1233 = vpack.c.bf16 %v1064, %v1060
      %v1234 = vpack.c.bf16 %v1072, %v1068
      %v1235 = vpack.c.bf16 %v1074, %v1070
      %v1236 = vpack.c.bf16 %v1082, %v1078
      %v1237 = vpack.c.bf16 %v1084, %v1080
      %v1238 = vpack.c.bf16 %v1092, %v1088
      %v1239 = vpack.c.bf16 %v1094, %v1090
      %v1240 = vpack.c.bf16 %v1102, %v1098
      %v1241 = vpack.c.bf16 %v1104, %v1100
      %v1242 = vpack.c.bf16 %v1112, %v1108
      %v1243 = vpack.c.bf16 %v1114, %v1110
      %v1244 = vpack.c.bf16 %v1122, %v1118
      %v1245 = vpack.c.bf16 %v1124, %v1120
      %v1246 = vpack.c.bf16 %v1132, %v1128
      %v1247 = vpack.c.bf16 %v1134, %v1130
      %v1248 = vpack.c.bf16 %v1142, %v1138
      %v1249 = vpack.c.bf16 %v1144, %v1140
      %v1250 = vpack.c.bf16 %v1152, %v1148
      %v1251 = vpack.c.bf16 %v1154, %v1150
      %v1252 = vpack.c.bf16 %v1162, %v1158
      %v1253 = vpack.c.bf16 %v1164, %v1160
      %v1254 = vpack.c.bf16 %v1172, %v1168
      %v1255 = vpack.c.bf16 %v1174, %v1170
      %v1256 = vpack.c.bf16 %v1182, %v1178
      %v1257 = vpack.c.bf16 %v1184, %v1180
      %v1258 = vpack.c.bf16 %v1192, %v1188
      %v1259 = vpack.c.bf16 %v1194, %v1190
      %v1260 = vpack.c.bf16 %v1202, %v1198
      %v1261 = vpack.c.bf16 %v1204, %v1200
      %v1262 = vpack.c.bf16 %v1212, %v1208
      %v1263 = vpack.c.bf16 %v1214, %v1210
      %v1312 = vunpack.c.l.b16 %v1216
      %v1313 = vunpack.c.l.b16 %v1217
      %v1314 = vunpack.c.h.b16 %v1216
      %v1315 = vunpack.c.h.b16 %v1217
      %v1316 = vunpack.c.l.b16 %v1218
      %v1317 = vunpack.c.l.b16 %v1219
      %v1318 = vunpack.c.h.b16 %v1218
      %v1319 = vunpack.c.h.b16 %v1219
      %v1320 = vunpack.c.l.b16 %v1220
      %v1321 = vunpack.c.l.b16 %v1221
      %v1322 = vunpack.c.h.b16 %v1220
      %v1323 = vunpack.c.h.b16 %v1221
      %v1324 = vunpack.c.l.b16 %v1222
      %v1325 = vunpack.c.l.b16 %v1223
      %v1326 = vunpack.c.h.b16 %v1222
      %v1327 = vunpack.c.h.b16 %v1223
      %v1328 = vunpack.c.l.b16 %v1224
      %v1329 = vunpack.c.l.b16 %v1225
      %v1330 = vunpack.c.h.b16 %v1224
      %v1331 = vunpack.c.h.b16 %v1225
      %v1332 = vunpack.c.l.b16 %v1226
      %v1333 = vunpack.c.l.b16 %v1227
      %v1334 = vunpack.c.h.b16 %v1226
      %v1335 = vunpack.c.h.b16 %v1227
      %v1336 = vunpack.c.l.b16 %v1228
      %v1337 = vunpack.c.l.b16 %v1229
      %v1338 = vunpack.c.h.b16 %v1228
      %v1339 = vunpack.c.h.b16 %v1229
      %v1340 = vunpack.c.l.b16 %v1230
      %v1341 = vunpack.c.l.b16 %v1231
      %v1342 = vunpack.c.h.b16 %v1230
      %v1343 = vunpack.c.h.b16 %v1231
      %v1344 = vunpack.c.l.b16 %v1232
      %v1345 = vunpack.c.l.b16 %v1233
      %v1346 = vunpack.c.h.b16 %v1232
      %v1347 = vunpack.c.h.b16 %v1233
      %v1348 = vunpack.c.l.b16 %v1234
      %v1349 = vunpack.c.l.b16 %v1235
      %v1350 = vunpack.c.h.b16 %v1234
      %v1351 = vunpack.c.h.b16 %v1235
      %v1352 = vunpack.c.l.b16 %v1236
      %v1353 = vunpack.c.l.b16 %v1237
      %v1354 = vunpack.c.h.b16 %v1236
      %v1355 = vunpack.c.h.b16 %v1237
      %v1356 = vunpack.c.l.b16 %v1238
      %v1357 = vunpack.c.l.b16 %v1239
      %v1358 = vunpack.c.h.b16 %v1238
      %v1359 = vunpack.c.h.b16 %v1239
      %v1360 = vunpack.c.l.b16 %v1240
      %v1361 = vunpack.c.l.b16 %v1241
      %v1362 = vunpack.c.h.b16 %v1240
      %v1363 = vunpack.c.h.b16 %v1241
      %v1364 = vunpack.c.l.b16 %v1242
      %v1365 = vunpack.c.l.b16 %v1243
      %v1366 = vunpack.c.h.b16 %v1242
      %v1367 = vunpack.c.h.b16 %v1243
      %v1368 = vunpack.c.l.b16 %v1244
      %v1369 = vunpack.c.l.b16 %v1245
      %v1370 = vunpack.c.h.b16 %v1244
      %v1371 = vunpack.c.h.b16 %v1245
      %v1372 = vunpack.c.l.b16 %v1246
      %v1373 = vunpack.c.l.b16 %v1247
      %v1374 = vunpack.c.h.b16 %v1246
      %v1375 = vunpack.c.h.b16 %v1247
      %v1376 = vunpack.c.l.b16 %v1248
      %v1377 = vunpack.c.l.b16 %v1249
      %v1378 = vunpack.c.h.b16 %v1248
      %v1379 = vunpack.c.h.b16 %v1249
      %v1380 = vunpack.c.l.b16 %v1250
      %v1381 = vunpack.c.l.b16 %v1251
      %v1382 = vunpack.c.h.b16 %v1250
      %v1383 = vunpack.c.h.b16 %v1251
      %v1384 = vunpack.c.l.b16 %v1252
      %v1385 = vunpack.c.l.b16 %v1253
      %v1386 = vunpack.c.h.b16 %v1252
      %v1387 = vunpack.c.h.b16 %v1253
      %v1388 = vunpack.c.l.b16 %v1254
      %v1389 = vunpack.c.l.b16 %v1255
      %v1390 = vunpack.c.h.b16 %v1254
      %v1391 = vunpack.c.h.b16 %v1255
      %v1392 = vunpack.c.l.b16 %v1256
      %v1393 = vunpack.c.l.b16 %v1257
      %v1394 = vunpack.c.h.b16 %v1256
      %v1395 = vunpack.c.h.b16 %v1257
      %v1396 = vunpack.c.l.b16 %v1258
      %v1397 = vunpack.c.l.b16 %v1259
      %v1398 = vunpack.c.h.b16 %v1258
      %v1399 = vunpack.c.h.b16 %v1259
      %v1400 = vunpack.c.l.b16 %v1260
      %v1401 = vunpack.c.l.b16 %v1261
      %v1402 = vunpack.c.h.b16 %v1260
      %v1403 = vunpack.c.h.b16 %v1261
      %v1404 = vunpack.c.l.b16 %v1262
      %v1405 = vunpack.c.l.b16 %v1263
      %v1406 = vunpack.c.h.b16 %v1262
      %v1407 = vunpack.c.h.b16 %v1263
      %v1408 = vpack.c.b16 %v1313, %v1312
      %v1409 = vpack.c.b16 %v1315, %v1314
      %v1410 = vpack.c.b16 %v1317, %v1316
      %v1411 = vpack.c.b16 %v1319, %v1318
      %v1412 = vpack.c.b16 %v1321, %v1320
      %v1413 = vpack.c.b16 %v1323, %v1322
      %v1414 = vpack.c.b16 %v1325, %v1324
      %v1415 = vpack.c.b16 %v1327, %v1326
      %v1416 = vpack.c.b16 %v1329, %v1328
      %v1417 = vpack.c.b16 %v1331, %v1330
      %v1418 = vpack.c.b16 %v1333, %v1332
      %v1419 = vpack.c.b16 %v1335, %v1334
      %v1420 = vpack.c.b16 %v1337, %v1336
      %v1421 = vpack.c.b16 %v1339, %v1338
      %v1422 = vpack.c.b16 %v1341, %v1340
      %v1423 = vpack.c.b16 %v1343, %v1342
      %v1424 = vpack.c.b16 %v1345, %v1344
      %v1425 = vpack.c.b16 %v1347, %v1346
      %v1426 = vpack.c.b16 %v1349, %v1348
      %v1427 = vpack.c.b16 %v1351, %v1350
      %v1428 = vpack.c.b16 %v1353, %v1352
      %v1429 = vpack.c.b16 %v1355, %v1354
      %v1430 = vpack.c.b16 %v1357, %v1356
      %v1431 = vpack.c.b16 %v1359, %v1358
      %v1432 = vpack.c.b16 %v1361, %v1360
      %v1433 = vpack.c.b16 %v1363, %v1362
      %v1434 = vpack.c.b16 %v1365, %v1364
      %v1435 = vpack.c.b16 %v1367, %v1366
      %v1436 = vpack.c.b16 %v1369, %v1368
      %v1437 = vpack.c.b16 %v1371, %v1370
      %v1438 = vpack.c.b16 %v1373, %v1372
      %v1439 = vpack.c.b16 %v1375, %v1374
      %v1440 = vpack.c.b16 %v1377, %v1376
      %v1441 = vpack.c.b16 %v1379, %v1378
      %v1442 = vpack.c.b16 %v1381, %v1380
      %v1443 = vpack.c.b16 %v1383, %v1382
      %v1444 = vpack.c.b16 %v1385, %v1384
      %v1445 = vpack.c.b16 %v1387, %v1386
      %v1446 = vpack.c.b16 %v1389, %v1388
      %v1447 = vpack.c.b16 %v1391, %v1390
      %v1448 = vpack.c.b16 %v1393, %v1392
      %v1449 = vpack.c.b16 %v1395, %v1394
      %v1450 = vpack.c.b16 %v1397, %v1396
      %v1451 = vpack.c.b16 %v1399, %v1398
      %v1452 = vpack.c.b16 %v1401, %v1400
      %v1453 = vpack.c.b16 %v1403, %v1402
      %v1454 = vpack.c.b16 %v1405, %v1404
      %v1455 = vpack.c.b16 %v1407, %v1406
      %1504 = vst [vmem:[#allocation2] sm:$0xff] %v1408
      %1505 = vst [vmem:[#allocation2 + $0x8] sm:$0xff] %v1409
      %1506 = vst [vmem:[#allocation2 + $0x10] sm:$0xff] %v1410
      %1507 = vst [vmem:[#allocation2 + $0x18] sm:$0xff] %v1411
      %1508 = vst [vmem:[#allocation2 + $0x20] sm:$0xff] %v1412
      %1509 = vst [vmem:[#allocation2 + $0x28] sm:$0xff] %v1413
      %1510 = vst [vmem:[#allocation2 + $0x30] sm:$0xff] %v1414
      %1511 = vst [vmem:[#allocation2 + $0x38] sm:$0xff] %v1415
      %1512 = vst [vmem:[#allocation2 + $0x40] sm:$0xff] %v1416
      %1513 = vst [vmem:[#allocation2 + $0x48] sm:$0xff] %v1417
      %1514 = vst [vmem:[#allocation2 + $0x50] sm:$0xff] %v1418
      %1515 = vst [vmem:[#allocation2 + $0x58] sm:$0xff] %v1419
      %1516 = vst [vmem:[#allocation2 + $0x60] sm:$0xff] %v1420
      %1517 = vst [vmem:[#allocation2 + $0x68] sm:$0xff] %v1421
      %1518 = vst [vmem:[#allocation2 + $0x70] sm:$0xff] %v1422
      %1519 = vst [vmem:[#allocation2 + $0x78] sm:$0xff] %v1423
      %1520 = vst [vmem:[#allocation2 + $0x80] sm:$0xff] %v1424
      %1521 = vst [vmem:[#allocation2 + $0x88] sm:$0xff] %v1425
      %1522 = vst [vmem:[#allocation2 + $0x90] sm:$0xff] %v1426
      %1523 = vst [vmem:[#allocation2 + $0x98] sm:$0xff] %v1427
      %1524 = vst [vmem:[#allocation2 + $0xa0] sm:$0xff] %v1428
      %1525 = vst [vmem:[#allocation2 + $0xa8] sm:$0xff] %v1429
      %1526 = vst [vmem:[#allocation2 + $0xb0] sm:$0xff] %v1430
      %1527 = vst [vmem:[#allocation2 + $0xb8] sm:$0xff] %v1431
      %1528 = vst [vmem:[#allocation2 + $0xc0] sm:$0xff] %v1432
      %1529 = vst [vmem:[#allocation2 + $0xc8] sm:$0xff] %v1433
      %1530 = vst [vmem:[#allocation2 + $0xd0] sm:$0xff] %v1434
      %1531 = vst [vmem:[#allocation2 + $0xd8] sm:$0xff] %v1435
      %1532 = vst [vmem:[#allocation2 + $0xe0] sm:$0xff] %v1436
      %1533 = vst [vmem:[#allocation2 + $0xe8] sm:$0xff] %v1437
      %1534 = vst [vmem:[#allocation2 + $0xf0] sm:$0xff] %v1438
      %1535 = vst [vmem:[#allocation2 + $0xf8] sm:$0xff] %v1439
      %1536 = vst [vmem:[#allocation2 + $0x100] sm:$0xff] %v1440
      %1537 = vst [vmem:[#allocation2 + $0x108] sm:$0xff] %v1441
      %1538 = vst [vmem:[#allocation2 + $0x110] sm:$0xff] %v1442
      %1539 = vst [vmem:[#allocation2 + $0x118] sm:$0xff] %v1443
      %1540 = vst [vmem:[#allocation2 + $0x120] sm:$0xff] %v1444
      %1541 = vst [vmem:[#allocation2 + $0x128] sm:$0xff] %v1445
      %1542 = vst [vmem:[#allocation2 + $0x130] sm:$0xff] %v1446
      %1543 = vst [vmem:[#allocation2 + $0x138] sm:$0xff] %v1447
      %1544 = vst [vmem:[#allocation2 + $0x140] sm:$0xff] %v1448
      %1545 = vst [vmem:[#allocation2 + $0x148] sm:$0xff] %v1449
      %1546 = vst [vmem:[#allocation2 + $0x150] sm:$0xff] %v1450
      %1547 = vst [vmem:[#allocation2 + $0x158] sm:$0xff] %v1451
      %1548 = vst [vmem:[#allocation2 + $0x160] sm:$0xff] %v1452
      %1549 = vst [vmem:[#allocation2 + $0x168] sm:$0xff] %v1453
      %1550 = vst [vmem:[#allocation2 + $0x170] sm:$0xff] %v1454
      %1551 = vst [vmem:[#allocation2 + $0x178] sm:$0xff] %v1455
      loop: start=0, step=1, limit=4
      $region41: #{_lambda_.1} parent=39 // loop_pre_header
        _
      $region42: #{_lambda_.1} parent=39 // loop_header
        %s1553 = sphi 0, %s1557
        %p1554 = scmp.ge.s32.totalorder %s1553, 4
      $region43: #{_lambda_.1} parent=39 // loop_header_branch
        %1556 = sbr.rel (%p1554) target = $region47
      $region44: #{_lambda_.1} parent=39 // loop_body
        %s1558 = smul.u32 %s1553, 8
        %s1559 = smul.addr %s1558, 4
        %s1560 = scalar_lea.vmem [#allocation2], %s1559
        %v1561 = vld [vmem:[%s1560] sm:$0xff]
        %v1562 = vld [vmem:[%s1560 + $0x8] sm:$0xff]
        %v1563 = vld [vmem:[%s1560 + $0x10] sm:$0xff]
        %v1564 = vld [vmem:[%s1560 + $0x18] sm:$0xff]
        %s1565 = sadd.s32 %s1553, 4
        %s1566 = smul.u32 %s1565, 8
        %s1567 = smul.addr %s1566, 4
        %s1568 = scalar_lea.vmem [#allocation2], %s1567
        %v1569 = vld [vmem:[%s1568] sm:$0xff]
        %v1570 = vld [vmem:[%s1568 + $0x8] sm:$0xff]
        %v1571 = vld [vmem:[%s1568 + $0x10] sm:$0xff]
        %v1572 = vld [vmem:[%s1568 + $0x18] sm:$0xff]
        %s1573 = sadd.s32 %s1553, 8
        %s1574 = smul.u32 %s1573, 8
        %s1575 = smul.addr %s1574, 4
        %s1576 = scalar_lea.vmem [#allocation2], %s1575
        %v1577 = vld [vmem:[%s1576] sm:$0xff]
        %v1578 = vld [vmem:[%s1576 + $0x8] sm:$0xff]
        %v1579 = vld [vmem:[%s1576 + $0x10] sm:$0xff]
        %v1580 = vld [vmem:[%s1576 + $0x18] sm:$0xff]
        %v1585 = vunpack.c.l.b16 %v1569
        %v1586 = vunpack.c.h.b16 %v1569
        %v1587 = vunpack.c.l.b16 %v1570
        %v1588 = vunpack.c.h.b16 %v1570
        %v1589 = vunpack.c.l.b16 %v1571
        %v1590 = vunpack.c.h.b16 %v1571
        %v1591 = vunpack.c.l.b16 %v1572
        %v1592 = vunpack.c.h.b16 %v1572
        %v1593 = vpack.c.b16 %v1587, %v1585
        %v1594 = vpack.c.b16 %v1588, %v1586
        %v1595 = vpack.c.b16 %v1591, %v1589
        %v1596 = vpack.c.b16 %v1592, %v1590
        %1601 = vxpose.xlu0.c.b16.start [1/8] %v1593, 128
        %1602 = vxpose.xlu0.c.b16.cont [2/8] %v1595, 128
        %1603 = vxpose.xlu0.c.b16.cont [3/8] 0, 128
        %1604 = vxpose.xlu0.c.b16.cont [4/8] 0, 128
        %1605 = vxpose.xlu0.c.b16.cont [5/8] 0, 128
        %1606 = vxpose.xlu0.c.b16.cont [6/8] 0, 128
        %1607 = vxpose.xlu0.c.b16.cont [7/8] 0, 128
        %1608 = vxpose.xlu0.c.b16.end [8/8] 0, 128
        %v1609 = vpop.trf.xlu0
        %v1610 = vpop.trf.xlu0
        %v1611 = vpop.trf.xlu0
        %v1612 = vpop.trf.xlu0
        %v1613 = vpop.trf.xlu0
        %v1614 = vpop.trf.xlu0
        %v1615 = vpop.trf.xlu0
        %v1616 = vpop.trf.xlu0
        %1617 = vxpose.xlu0.c.b16.start [1/8] %v1594, 128
        %1618 = vxpose.xlu0.c.b16.cont [2/8] %v1596, 128
        %1619 = vxpose.xlu0.c.b16.cont [3/8] 0, 128
        %1620 = vxpose.xlu0.c.b16.cont [4/8] 0, 128
        %1621 = vxpose.xlu0.c.b16.cont [5/8] 0, 128
        %1622 = vxpose.xlu0.c.b16.cont [6/8] 0, 128
        %1623 = vxpose.xlu0.c.b16.cont [7/8] 0, 128
        %1624 = vxpose.xlu0.c.b16.end [8/8] 0, 128
        %v1625 = vpop.trf.xlu0
        %v1626 = vpop.trf.xlu0
        %v1627 = vpop.trf.xlu0
        %v1628 = vpop.trf.xlu0
        %v1629 = vpop.trf.xlu0
        %v1630 = vpop.trf.xlu0
        %v1631 = vpop.trf.xlu0
        %v1632 = vpop.trf.xlu0
        %v1637 = vunpack.c.l.b16 %v1561
        %v1638 = vunpack.c.h.b16 %v1561
        %v1639 = vunpack.c.l.b16 %v1562
        %v1640 = vunpack.c.h.b16 %v1562
        %v1641 = vunpack.c.l.b16 %v1563
        %v1642 = vunpack.c.h.b16 %v1563
        %v1643 = vunpack.c.l.b16 %v1564
        %v1644 = vunpack.c.h.b16 %v1564
        %v1645 = vpack.c.b16 %v1639, %v1637
        %v1646 = vpack.c.b16 %v1640, %v1638
        %v1647 = vpack.c.b16 %v1643, %v1641
        %v1648 = vpack.c.b16 %v1644, %v1642
        %vm1653 = vcmask 261120
        %v1655 = vsel %vm1653, %v1609, 0
        %v1658 = vsel %vm1653, %v1610, 0
        %v1661 = vsel %vm1653, %v1611, 0
        %v1664 = vsel %vm1653, %v1612, 0
        %v1667 = vsel %vm1653, %v1613, 0
        %v1670 = vsel %vm1653, %v1614, 0
        %v1673 = vsel %vm1653, %v1615, 0
        %v1676 = vsel %vm1653, %v1616, 0
        %v1679 = vsel %vm1653, %v1625, 0
        %v1682 = vsel %vm1653, %v1626, 0
        %v1685 = vsel %vm1653, %v1627, 0
        %v1688 = vsel %vm1653, %v1628, 0
        %v1691 = vsel %vm1653, %v1629, 0
        %v1694 = vsel %vm1653, %v1630, 0
        %v1697 = vsel %vm1653, %v1631, 0
        %v1700 = vsel %vm1653, %v1632, 0
        %1702 = vmatprep.subr.bf16.mxu0 0
        %1703 = vmatpush1.bf16.msra.mxu0 0
        %1704 = vmatprep.subr.bf16.mxu0 0
        %1705 = vmatpush1.bf16.msra.mxu0 0
        %1706 = vmatprep.subr.bf16.mxu0 0
        %1707 = vmatpush1.bf16.msra.mxu0 0
        %1708 = vmatprep.subr.bf16.mxu0 0
        %1709 = vmatpush1.bf16.msra.mxu0 0
        %1710 = vmatprep.subr.bf16.mxu0 0
        %1711 = vmatpush1.bf16.msra.mxu0 0
        %1712 = vmatprep.subr.bf16.mxu0 0
        %1713 = vmatpush1.bf16.msra.mxu0 0
        %1714 = vmatprep.subr.bf16.mxu0 %v1648
        %1715 = vmatpush1.bf16.msra.mxu0 %v1647
        %1716 = vmatprep.subr.bf16.mxu0 %v1646
        %1717 = vmatpush1.bf16.msra.mxu0 %v1645
        %1718 = vmatprep.subr.bf16.mxu0 0
        %1719 = vmatpush2.bf16.msra.mxu0 0
        %1720 = vmatprep.subr.bf16.mxu0 0
        %1721 = vmatpush2.bf16.msra.mxu0 0
        %1722 = vmatprep.subr.bf16.mxu0 0
        %1723 = vmatpush2.bf16.msra.mxu0 0
        %1724 = vmatprep.subr.bf16.mxu0 0
        %1725 = vmatpush2.bf16.msra.mxu0 0
        %1726 = vmatprep.subr.bf16.mxu0 0
        %1727 = vmatpush2.bf16.msra.mxu0 0
        %1728 = vmatprep.subr.bf16.mxu0 0
        %1729 = vmatpush2.bf16.msra.mxu0 0
        %1730 = vmatprep.subr.bf16.mxu0 0
        %1731 = vmatpush2.bf16.msra.mxu0 0
        %1732 = vmatprep.subr.bf16.mxu0 0
        %1733 = vmatpush2.bf16.msra.mxu0 0
        %1734 = vmatprep.mubr.bf16.mxu0 0
        %1735 = vmatmul.mubr.bf16.gmra.mxu0 %v1655
        %v1736 = vpop.f32.mrf.mxu0
        %v1737 = vadd.f32 0.0, %v1736
        %v1738 = vpop.f32.mrf.mxu0
        %v1739 = vadd.f32 0.0, %v1738
        %v1740 = vpop.f32.mrf.mxu0
        %v1741 = vadd.f32 0.0, %v1740
        %v1742 = vpop.f32.mrf.mxu0
        %v1743 = vadd.f32 0.0, %v1742
        %1744 = vmatprep.mubr.bf16.mxu0 0
        %1745 = vmatmul.mubr.bf16.gmra.mxu0 %v1658
        %v1746 = vpop.f32.mrf.mxu0
        %v1747 = vadd.f32 0.0, %v1746
        %v1748 = vpop.f32.mrf.mxu0
        %v1749 = vadd.f32 0.0, %v1748
        %v1750 = vpop.f32.mrf.mxu0
        %v1751 = vadd.f32 0.0, %v1750
        %v1752 = vpop.f32.mrf.mxu0
        %v1753 = vadd.f32 0.0, %v1752
        %1754 = vmatprep.mubr.bf16.mxu0 0
        %1755 = vmatmul.mubr.bf16.gmra.mxu0 %v1661
        %v1756 = vpop.f32.mrf.mxu0
        %v1757 = vadd.f32 0.0, %v1756
        %v1758 = vpop.f32.mrf.mxu0
        %v1759 = vadd.f32 0.0, %v1758
        %v1760 = vpop.f32.mrf.mxu0
        %v1761 = vadd.f32 0.0, %v1760
        %v1762 = vpop.f32.mrf.mxu0
        %v1763 = vadd.f32 0.0, %v1762
        %1764 = vmatprep.mubr.bf16.mxu0 0
        %1765 = vmatmul.mubr.bf16.gmra.mxu0 %v1664
        %v1766 = vpop.f32.mrf.mxu0
        %v1767 = vadd.f32 0.0, %v1766
        %v1768 = vpop.f32.mrf.mxu0
        %v1769 = vadd.f32 0.0, %v1768
        %v1770 = vpop.f32.mrf.mxu0
        %v1771 = vadd.f32 0.0, %v1770
        %v1772 = vpop.f32.mrf.mxu0
        %v1773 = vadd.f32 0.0, %v1772
        %1774 = vmatprep.mubr.bf16.mxu0 0
        %1775 = vmatmul.mubr.bf16.gmra.mxu0 %v1667
        %v1776 = vpop.f32.mrf.mxu0
        %v1777 = vadd.f32 0.0, %v1776
        %v1778 = vpop.f32.mrf.mxu0
        %v1779 = vadd.f32 0.0, %v1778
        %v1780 = vpop.f32.mrf.mxu0
        %v1781 = vadd.f32 0.0, %v1780
        %v1782 = vpop.f32.mrf.mxu0
        %v1783 = vadd.f32 0.0, %v1782
        %1784 = vmatprep.mubr.bf16.mxu0 0
        %1785 = vmatmul.mubr.bf16.gmra.mxu0 %v1670
        %v1786 = vpop.f32.mrf.mxu0
        %v1787 = vadd.f32 0.0, %v1786
        %v1788 = vpop.f32.mrf.mxu0
        %v1789 = vadd.f32 0.0, %v1788
        %v1790 = vpop.f32.mrf.mxu0
        %v1791 = vadd.f32 0.0, %v1790
        %v1792 = vpop.f32.mrf.mxu0
        %v1793 = vadd.f32 0.0, %v1792
        %1794 = vmatprep.mubr.bf16.mxu0 0
        %1795 = vmatmul.mubr.bf16.gmra.mxu0 %v1673
        %v1796 = vpop.f32.mrf.mxu0
        %v1797 = vadd.f32 0.0, %v1796
        %v1798 = vpop.f32.mrf.mxu0
        %v1799 = vadd.f32 0.0, %v1798
        %v1800 = vpop.f32.mrf.mxu0
        %v1801 = vadd.f32 0.0, %v1800
        %v1802 = vpop.f32.mrf.mxu0
        %v1803 = vadd.f32 0.0, %v1802
        %1804 = vmatprep.mubr.bf16.mxu0 0
        %1805 = vmatmul.mubr.bf16.gmra.mxu0 %v1676
        %v1806 = vpop.f32.mrf.mxu0
        %v1807 = vadd.f32 0.0, %v1806
        %v1808 = vpop.f32.mrf.mxu0
        %v1809 = vadd.f32 0.0, %v1808
        %v1810 = vpop.f32.mrf.mxu0
        %v1811 = vadd.f32 0.0, %v1810
        %v1812 = vpop.f32.mrf.mxu0
        %v1813 = vadd.f32 0.0, %v1812
        %1814 = vmatprep.mubr.bf16.mxu0 0
        %1815 = vmatmul.mubr.bf16.gmra.mxu0 %v1679
        %v1816 = vpop.f32.mrf.mxu0
        %v1817 = vadd.f32 0.0, %v1816
        %v1818 = vpop.f32.mrf.mxu0
        %v1819 = vadd.f32 0.0, %v1818
        %v1820 = vpop.f32.mrf.mxu0
        %v1821 = vadd.f32 0.0, %v1820
        %v1822 = vpop.f32.mrf.mxu0
        %v1823 = vadd.f32 0.0, %v1822
        %1824 = vmatprep.mubr.bf16.mxu0 0
        %1825 = vmatmul.mubr.bf16.gmra.mxu0 %v1682
        %v1826 = vpop.f32.mrf.mxu0
        %v1827 = vadd.f32 0.0, %v1826
        %v1828 = vpop.f32.mrf.mxu0
        %v1829 = vadd.f32 0.0, %v1828
        %v1830 = vpop.f32.mrf.mxu0
        %v1831 = vadd.f32 0.0, %v1830
        %v1832 = vpop.f32.mrf.mxu0
        %v1833 = vadd.f32 0.0, %v1832
        %1834 = vmatprep.mubr.bf16.mxu0 0
        %1835 = vmatmul.mubr.bf16.gmra.mxu0 %v1685
        %v1836 = vpop.f32.mrf.mxu0
        %v1837 = vadd.f32 0.0, %v1836
        %v1838 = vpop.f32.mrf.mxu0
        %v1839 = vadd.f32 0.0, %v1838
        %v1840 = vpop.f32.mrf.mxu0
        %v1841 = vadd.f32 0.0, %v1840
        %v1842 = vpop.f32.mrf.mxu0
        %v1843 = vadd.f32 0.0, %v1842
        %1844 = vmatprep.mubr.bf16.mxu0 0
        %1845 = vmatmul.mubr.bf16.gmra.mxu0 %v1688
        %v1846 = vpop.f32.mrf.mxu0
        %v1847 = vadd.f32 0.0, %v1846
        %v1848 = vpop.f32.mrf.mxu0
        %v1849 = vadd.f32 0.0, %v1848
        %v1850 = vpop.f32.mrf.mxu0
        %v1851 = vadd.f32 0.0, %v1850
        %v1852 = vpop.f32.mrf.mxu0
        %v1853 = vadd.f32 0.0, %v1852
        %1854 = vmatprep.mubr.bf16.mxu0 0
        %1855 = vmatmul.mubr.bf16.gmra.mxu0 %v1691
        %v1856 = vpop.f32.mrf.mxu0
        %v1857 = vadd.f32 0.0, %v1856
        %v1858 = vpop.f32.mrf.mxu0
        %v1859 = vadd.f32 0.0, %v1858
        %v1860 = vpop.f32.mrf.mxu0
        %v1861 = vadd.f32 0.0, %v1860
        %v1862 = vpop.f32.mrf.mxu0
        %v1863 = vadd.f32 0.0, %v1862
        %1864 = vmatprep.mubr.bf16.mxu0 0
        %1865 = vmatmul.mubr.bf16.gmra.mxu0 %v1694
        %v1866 = vpop.f32.mrf.mxu0
        %v1867 = vadd.f32 0.0, %v1866
        %v1868 = vpop.f32.mrf.mxu0
        %v1869 = vadd.f32 0.0, %v1868
        %v1870 = vpop.f32.mrf.mxu0
        %v1871 = vadd.f32 0.0, %v1870
        %v1872 = vpop.f32.mrf.mxu0
        %v1873 = vadd.f32 0.0, %v1872
        %1874 = vmatprep.mubr.bf16.mxu0 0
        %1875 = vmatmul.mubr.bf16.gmra.mxu0 %v1697
        %v1876 = vpop.f32.mrf.mxu0
        %v1877 = vadd.f32 0.0, %v1876
        %v1878 = vpop.f32.mrf.mxu0
        %v1879 = vadd.f32 0.0, %v1878
        %v1880 = vpop.f32.mrf.mxu0
        %v1881 = vadd.f32 0.0, %v1880
        %v1882 = vpop.f32.mrf.mxu0
        %v1883 = vadd.f32 0.0, %v1882
        %1884 = vmatprep.mubr.bf16.mxu0 0
        %1885 = vmatmul.mubr.bf16.gmra.mxu0 %v1700
        %v1886 = vpop.f32.mrf.mxu0
        %v1887 = vadd.f32 0.0, %v1886
        %v1888 = vpop.f32.mrf.mxu0
        %v1889 = vadd.f32 0.0, %v1888
        %v1890 = vpop.f32.mrf.mxu0
        %v1891 = vadd.f32 0.0, %v1890
        %v1892 = vpop.f32.mrf.mxu0
        %v1893 = vadd.f32 0.0, %v1892
        %1894 = vdwg.mxu0
        %v1895 = vmax.f32 %v1737, %v1747
        %v1896 = vmax.f32 %v1741, %v1751
        %v1897 = vmax.f32 %v1895, %v1757
        %v1898 = vmax.f32 %v1896, %v1761
        %v1899 = vmax.f32 %v1897, %v1767
        %v1900 = vmax.f32 %v1898, %v1771
        %v1901 = vmax.f32 %v1899, %v1777
        %v1902 = vmax.f32 %v1900, %v1781
        %v1903 = vmax.f32 %v1901, %v1787
        %v1904 = vmax.f32 %v1902, %v1791
        %v1905 = vmax.f32 %v1903, %v1797
        %v1906 = vmax.f32 %v1904, %v1801
        %v1907 = vmax.f32 %v1905, %v1807
        %v1908 = vmax.f32 %v1906, %v1811
        %v1909 = vmax.f32 %v1907, %v1817
        %v1910 = vmax.f32 %v1908, %v1821
        %v1911 = vmax.f32 %v1909, %v1827
        %v1912 = vmax.f32 %v1910, %v1831
        %v1913 = vmax.f32 %v1911, %v1837
        %v1914 = vmax.f32 %v1912, %v1841
        %v1915 = vmax.f32 %v1913, %v1847
        %v1916 = vmax.f32 %v1914, %v1851
        %v1917 = vmax.f32 %v1915, %v1857
        %v1918 = vmax.f32 %v1916, %v1861
        %v1919 = vmax.f32 %v1917, %v1867
        %v1920 = vmax.f32 %v1918, %v1871
        %v1921 = vmax.f32 %v1919, %v1877
        %v1922 = vmax.f32 %v1920, %v1881
        %v1923 = vmax.f32 %v1921, %v1887
        %v1924 = vmax.f32 %v1922, %v1891
        %v1925 = vmax.f32 %v1923, %v1924
        %v1926 = vrot.slane %v1925, 4
        %v1927 = vmax.f32 %v1925, %v1926
        %v1928 = vrot.slane %v1927, 2
        %v1929 = vmax.f32 %v1927, %v1928
        %v1930 = vrot.slane %v1929, 1
        %v1931 = vmax.f32 %v1929, %v1930
        %v1932 = vmax.f32 %v1739, %v1749
        %v1933 = vmax.f32 %v1743, %v1753
        %v1934 = vmax.f32 %v1932, %v1759
        %v1935 = vmax.f32 %v1933, %v1763
        %v1936 = vmax.f32 %v1934, %v1769
        %v1937 = vmax.f32 %v1935, %v1773
        %v1938 = vmax.f32 %v1936, %v1779
        %v1939 = vmax.f32 %v1937, %v1783
        %v1940 = vmax.f32 %v1938, %v1789
        %v1941 = vmax.f32 %v1939, %v1793
        %v1942 = vmax.f32 %v1940, %v1799
        %v1943 = vmax.f32 %v1941, %v1803
        %v1944 = vmax.f32 %v1942, %v1809
        %v1945 = vmax.f32 %v1943, %v1813
        %v1946 = vmax.f32 %v1944, %v1819
        %v1947 = vmax.f32 %v1945, %v1823
        %v1948 = vmax.f32 %v1946, %v1829
        %v1949 = vmax.f32 %v1947, %v1833
        %v1950 = vmax.f32 %v1948, %v1839
        %v1951 = vmax.f32 %v1949, %v1843
        %v1952 = vmax.f32 %v1950, %v1849
        %v1953 = vmax.f32 %v1951, %v1853
        %v1954 = vmax.f32 %v1952, %v1859
        %v1955 = vmax.f32 %v1953, %v1863
        %v1956 = vmax.f32 %v1954, %v1869
        %v1957 = vmax.f32 %v1955, %v1873
        %v1958 = vmax.f32 %v1956, %v1879
        %v1959 = vmax.f32 %v1957, %v1883
        %v1960 = vmax.f32 %v1958, %v1889
        %v1961 = vmax.f32 %v1959, %v1893
        %v1962 = vmax.f32 %v1960, %v1961
        %v1963 = vrot.slane %v1962, 4
        %v1964 = vmax.f32 %v1962, %v1963
        %v1965 = vrot.slane %v1964, 2
        %v1966 = vmax.f32 %v1964, %v1965
        %v1967 = vrot.slane %v1966, 1
        %v1968 = vmax.f32 %v1966, %v1967
        %v1969 = vsub.f32 %v1737, %v1931
        %v1970 = vsub.f32 %v1739, %v1968
        %v1971 = vsub.f32 %v1741, %v1931
        %v1972 = vsub.f32 %v1743, %v1968
        %v1973 = vsub.f32 %v1747, %v1931
        %v1974 = vsub.f32 %v1749, %v1968
        %v1975 = vsub.f32 %v1751, %v1931
        %v1976 = vsub.f32 %v1753, %v1968
        %v1977 = vsub.f32 %v1757, %v1931
        %v1978 = vsub.f32 %v1759, %v1968
        %v1979 = vsub.f32 %v1761, %v1931
        %v1980 = vsub.f32 %v1763, %v1968
        %v1981 = vsub.f32 %v1767, %v1931
        %v1982 = vsub.f32 %v1769, %v1968
        %v1983 = vsub.f32 %v1771, %v1931
        %v1984 = vsub.f32 %v1773, %v1968
        %v1985 = vsub.f32 %v1777, %v1931
        %v1986 = vsub.f32 %v1779, %v1968
        %v1987 = vsub.f32 %v1781, %v1931
        %v1988 = vsub.f32 %v1783, %v1968
        %v1989 = vsub.f32 %v1787, %v1931
        %v1990 = vsub.f32 %v1789, %v1968
        %v1991 = vsub.f32 %v1791, %v1931
        %v1992 = vsub.f32 %v1793, %v1968
        %v1993 = vsub.f32 %v1797, %v1931
        %v1994 = vsub.f32 %v1799, %v1968
        %v1995 = vsub.f32 %v1801, %v1931
        %v1996 = vsub.f32 %v1803, %v1968
        %v1997 = vsub.f32 %v1807, %v1931
        %v1998 = vsub.f32 %v1809, %v1968
        %v1999 = vsub.f32 %v1811, %v1931
        %v2000 = vsub.f32 %v1813, %v1968
        %v2001 = vsub.f32 %v1817, %v1931
        %v2002 = vsub.f32 %v1819, %v1968
        %v2003 = vsub.f32 %v1821, %v1931
        %v2004 = vsub.f32 %v1823, %v1968
        %v2005 = vsub.f32 %v1827, %v1931
        %v2006 = vsub.f32 %v1829, %v1968
        %v2007 = vsub.f32 %v1831, %v1931
        %v2008 = vsub.f32 %v1833, %v1968
        %v2009 = vsub.f32 %v1837, %v1931
        %v2010 = vsub.f32 %v1839, %v1968
        %v2011 = vsub.f32 %v1841, %v1931
        %v2012 = vsub.f32 %v1843, %v1968
        %v2013 = vsub.f32 %v1847, %v1931
        %v2014 = vsub.f32 %v1849, %v1968
        %v2015 = vsub.f32 %v1851, %v1931
        %v2016 = vsub.f32 %v1853, %v1968
        %v2017 = vsub.f32 %v1857, %v1931
        %v2018 = vsub.f32 %v1859, %v1968
        %v2019 = vsub.f32 %v1861, %v1931
        %v2020 = vsub.f32 %v1863, %v1968
        %v2021 = vsub.f32 %v1867, %v1931
        %v2022 = vsub.f32 %v1869, %v1968
        %v2023 = vsub.f32 %v1871, %v1931
        %v2024 = vsub.f32 %v1873, %v1968
        %v2025 = vsub.f32 %v1877, %v1931
        %v2026 = vsub.f32 %v1879, %v1968
        %v2027 = vsub.f32 %v1881, %v1931
        %v2028 = vsub.f32 %v1883, %v1968
        %v2029 = vsub.f32 %v1887, %v1931
        %v2030 = vsub.f32 %v1889, %v1968
        %v2031 = vsub.f32 %v1891, %v1931
        %v2032 = vsub.f32 %v1893, %v1968
        %v2033 = vmul.f32 %v1969, 1.442695
        %v2034 = vpow.pop %v2033
        %v2035 = vmul.f32 %v1970, 1.442695
        %v2036 = vpow.pop %v2035
        %v2037 = vmul.f32 %v1971, 1.442695
        %v2038 = vpow.pop %v2037
        %v2039 = vmul.f32 %v1972, 1.442695
        %v2040 = vpow.pop %v2039
        %v2041 = vmul.f32 %v1973, 1.442695
        %v2042 = vpow.pop %v2041
        %v2043 = vmul.f32 %v1974, 1.442695
        %v2044 = vpow.pop %v2043
        %v2045 = vmul.f32 %v1975, 1.442695
        %v2046 = vpow.pop %v2045
        %v2047 = vmul.f32 %v1976, 1.442695
        %v2048 = vpow.pop %v2047
        %v2049 = vmul.f32 %v1977, 1.442695
        %v2050 = vpow.pop %v2049
        %v2051 = vmul.f32 %v1978, 1.442695
        %v2052 = vpow.pop %v2051
        %v2053 = vmul.f32 %v1979, 1.442695
        %v2054 = vpow.pop %v2053
        %v2055 = vmul.f32 %v1980, 1.442695
        %v2056 = vpow.pop %v2055
        %v2057 = vmul.f32 %v1981, 1.442695
        %v2058 = vpow.pop %v2057
        %v2059 = vmul.f32 %v1982, 1.442695
        %v2060 = vpow.pop %v2059
        %v2061 = vmul.f32 %v1983, 1.442695
        %v2062 = vpow.pop %v2061
        %v2063 = vmul.f32 %v1984, 1.442695
        %v2064 = vpow.pop %v2063
        %v2065 = vmul.f32 %v1985, 1.442695
        %v2066 = vpow.pop %v2065
        %v2067 = vmul.f32 %v1986, 1.442695
        %v2068 = vpow.pop %v2067
        %v2069 = vmul.f32 %v1987, 1.442695
        %v2070 = vpow.pop %v2069
        %v2071 = vmul.f32 %v1988, 1.442695
        %v2072 = vpow.pop %v2071
        %v2073 = vmul.f32 %v1989, 1.442695
        %v2074 = vpow.pop %v2073
        %v2075 = vmul.f32 %v1990, 1.442695
        %v2076 = vpow.pop %v2075
        %v2077 = vmul.f32 %v1991, 1.442695
        %v2078 = vpow.pop %v2077
        %v2079 = vmul.f32 %v1992, 1.442695
        %v2080 = vpow.pop %v2079
        %v2081 = vmul.f32 %v1993, 1.442695
        %v2082 = vpow.pop %v2081
        %v2083 = vmul.f32 %v1994, 1.442695
        %v2084 = vpow.pop %v2083
        %v2085 = vmul.f32 %v1995, 1.442695
        %v2086 = vpow.pop %v2085
        %v2087 = vmul.f32 %v1996, 1.442695
        %v2088 = vpow.pop %v2087
        %v2089 = vmul.f32 %v1997, 1.442695
        %v2090 = vpow.pop %v2089
        %v2091 = vmul.f32 %v1998, 1.442695
        %v2092 = vpow.pop %v2091
        %v2093 = vmul.f32 %v1999, 1.442695
        %v2094 = vpow.pop %v2093
        %v2095 = vmul.f32 %v2000, 1.442695
        %v2096 = vpow.pop %v2095
        %v2097 = vmul.f32 %v2001, 1.442695
        %v2098 = vpow.pop %v2097
        %v2099 = vmul.f32 %v2002, 1.442695
        %v2100 = vpow.pop %v2099
        %v2101 = vmul.f32 %v2003, 1.442695
        %v2102 = vpow.pop %v2101
        %v2103 = vmul.f32 %v2004, 1.442695
        %v2104 = vpow.pop %v2103
        %v2105 = vmul.f32 %v2005, 1.442695
        %v2106 = vpow.pop %v2105
        %v2107 = vmul.f32 %v2006, 1.442695
        %v2108 = vpow.pop %v2107
        %v2109 = vmul.f32 %v2007, 1.442695
        %v2110 = vpow.pop %v2109
        %v2111 = vmul.f32 %v2008, 1.442695
        %v2112 = vpow.pop %v2111
        %v2113 = vmul.f32 %v2009, 1.442695
        %v2114 = vpow.pop %v2113
        %v2115 = vmul.f32 %v2010, 1.442695
        %v2116 = vpow.pop %v2115
        %v2117 = vmul.f32 %v2011, 1.442695
        %v2118 = vpow.pop %v2117
        %v2119 = vmul.f32 %v2012, 1.442695
        %v2120 = vpow.pop %v2119
        %v2121 = vmul.f32 %v2013, 1.442695
        %v2122 = vpow.pop %v2121
        %v2123 = vmul.f32 %v2014, 1.442695
        %v2124 = vpow.pop %v2123
        %v2125 = vmul.f32 %v2015, 1.442695
        %v2126 = vpow.pop %v2125
        %v2127 = vmul.f32 %v2016, 1.442695
        %v2128 = vpow.pop %v2127
        %v2129 = vmul.f32 %v2017, 1.442695
        %v2130 = vpow.pop %v2129
        %v2131 = vmul.f32 %v2018, 1.442695
        %v2132 = vpow.pop %v2131
        %v2133 = vmul.f32 %v2019, 1.442695
        %v2134 = vpow.pop %v2133
        %v2135 = vmul.f32 %v2020, 1.442695
        %v2136 = vpow.pop %v2135
        %v2137 = vmul.f32 %v2021, 1.442695
        %v2138 = vpow.pop %v2137
        %v2139 = vmul.f32 %v2022, 1.442695
        %v2140 = vpow.pop %v2139
        %v2141 = vmul.f32 %v2023, 1.442695
        %v2142 = vpow.pop %v2141
        %v2143 = vmul.f32 %v2024, 1.442695
        %v2144 = vpow.pop %v2143
        %v2145 = vmul.f32 %v2025, 1.442695
        %v2146 = vpow.pop %v2145
        %v2147 = vmul.f32 %v2026, 1.442695
        %v2148 = vpow.pop %v2147
        %v2149 = vmul.f32 %v2027, 1.442695
        %v2150 = vpow.pop %v2149
        %v2151 = vmul.f32 %v2028, 1.442695
        %v2152 = vpow.pop %v2151
        %v2153 = vmul.f32 %v2029, 1.442695
        %v2154 = vpow.pop %v2153
        %v2155 = vmul.f32 %v2030, 1.442695
        %v2156 = vpow.pop %v2155
        %v2157 = vmul.f32 %v2031, 1.442695
        %v2158 = vpow.pop %v2157
        %v2159 = vmul.f32 %v2032, 1.442695
        %v2160 = vpow.pop %v2159
        %v2161 = vadd.f32 %v2034, %v2038
        %v2162 = vadd.f32 %v2161, %v2042
        %v2163 = vadd.f32 %v2162, %v2046
        %v2164 = vadd.f32 %v2163, %v2050
        %v2165 = vadd.f32 %v2164, %v2054
        %v2166 = vadd.f32 %v2165, %v2058
        %v2167 = vadd.f32 %v2166, %v2062
        %v2168 = vadd.f32 %v2167, %v2066
        %v2169 = vadd.f32 %v2168, %v2070
        %v2170 = vadd.f32 %v2169, %v2074
        %v2171 = vadd.f32 %v2170, %v2078
        %v2172 = vadd.f32 %v2171, %v2082
        %v2173 = vadd.f32 %v2172, %v2086
        %v2174 = vadd.f32 %v2173, %v2090
        %v2175 = vadd.f32 %v2174, %v2094
        %v2176 = vadd.f32 %v2175, %v2098
        %v2177 = vadd.f32 %v2176, %v2102
        %v2178 = vadd.f32 %v2177, %v2106
        %v2179 = vadd.f32 %v2178, %v2110
        %v2180 = vadd.f32 %v2179, %v2114
        %v2181 = vadd.f32 %v2180, %v2118
        %v2182 = vadd.f32 %v2181, %v2122
        %v2183 = vadd.f32 %v2182, %v2126
        %v2184 = vadd.f32 %v2183, %v2130
        %v2185 = vadd.f32 %v2184, %v2134
        %v2186 = vadd.f32 %v2185, %v2138
        %v2187 = vadd.f32 %v2186, %v2142
        %v2188 = vadd.f32 %v2187, %v2146
        %v2189 = vadd.f32 %v2188, %v2150
        %v2190 = vadd.f32 %v2189, %v2154
        %v2191 = vadd.f32 %v2190, %v2158
        %v2192 = vrot.slane %v2191, 4
        %v2193 = vadd.f32 %v2191, %v2192
        %v2194 = vrot.slane %v2193, 2
        %v2195 = vadd.f32 %v2193, %v2194
        %v2196 = vrot.slane %v2195, 1
        %v2197 = vadd.f32 %v2195, %v2196
        %v2198 = vadd.f32 %v2036, %v2040
        %v2199 = vadd.f32 %v2198, %v2044
        %v2200 = vadd.f32 %v2199, %v2048
        %v2201 = vadd.f32 %v2200, %v2052
        %v2202 = vadd.f32 %v2201, %v2056
        %v2203 = vadd.f32 %v2202, %v2060
        %v2204 = vadd.f32 %v2203, %v2064
        %v2205 = vadd.f32 %v2204, %v2068
        %v2206 = vadd.f32 %v2205, %v2072
        %v2207 = vadd.f32 %v2206, %v2076
        %v2208 = vadd.f32 %v2207, %v2080
        %v2209 = vadd.f32 %v2208, %v2084
        %v2210 = vadd.f32 %v2209, %v2088
        %v2211 = vadd.f32 %v2210, %v2092
        %v2212 = vadd.f32 %v2211, %v2096
        %v2213 = vadd.f32 %v2212, %v2100
        %v2214 = vadd.f32 %v2213, %v2104
        %v2215 = vadd.f32 %v2214, %v2108
        %v2216 = vadd.f32 %v2215, %v2112
        %v2217 = vadd.f32 %v2216, %v2116
        %v2218 = vadd.f32 %v2217, %v2120
        %v2219 = vadd.f32 %v2218, %v2124
        %v2220 = vadd.f32 %v2219, %v2128
        %v2221 = vadd.f32 %v2220, %v2132
        %v2222 = vadd.f32 %v2221, %v2136
        %v2223 = vadd.f32 %v2222, %v2140
        %v2224 = vadd.f32 %v2223, %v2144
        %v2225 = vadd.f32 %v2224, %v2148
        %v2226 = vadd.f32 %v2225, %v2152
        %v2227 = vadd.f32 %v2226, %v2156
        %v2228 = vadd.f32 %v2227, %v2160
        %v2229 = vrot.slane %v2228, 4
        %v2230 = vadd.f32 %v2228, %v2229
        %v2231 = vrot.slane %v2230, 2
        %v2232 = vadd.f32 %v2230, %v2231
        %v2233 = vrot.slane %v2232, 1
        %v2234 = vadd.f32 %v2232, %v2233
        %v2235 = vpack.c.bf16 %v2038, %v2034
        %v2236 = vpack.c.bf16 %v2040, %v2036
        %v2237 = vpack.c.bf16 %v2046, %v2042
        %v2238 = vpack.c.bf16 %v2048, %v2044
        %v2239 = vpack.c.bf16 %v2054, %v2050
        %v2240 = vpack.c.bf16 %v2056, %v2052
        %v2241 = vpack.c.bf16 %v2062, %v2058
        %v2242 = vpack.c.bf16 %v2064, %v2060
        %v2243 = vpack.c.bf16 %v2070, %v2066
        %v2244 = vpack.c.bf16 %v2072, %v2068
        %v2245 = vpack.c.bf16 %v2078, %v2074
        %v2246 = vpack.c.bf16 %v2080, %v2076
        %v2247 = vpack.c.bf16 %v2086, %v2082
        %v2248 = vpack.c.bf16 %v2088, %v2084
        %v2249 = vpack.c.bf16 %v2094, %v2090
        %v2250 = vpack.c.bf16 %v2096, %v2092
        %v2251 = vpack.c.bf16 %v2102, %v2098
        %v2252 = vpack.c.bf16 %v2104, %v2100
        %v2253 = vpack.c.bf16 %v2110, %v2106
        %v2254 = vpack.c.bf16 %v2112, %v2108
        %v2255 = vpack.c.bf16 %v2118, %v2114
        %v2256 = vpack.c.bf16 %v2120, %v2116
        %v2257 = vpack.c.bf16 %v2126, %v2122
        %v2258 = vpack.c.bf16 %v2128, %v2124
        %v2259 = vpack.c.bf16 %v2134, %v2130
        %v2260 = vpack.c.bf16 %v2136, %v2132
        %v2261 = vpack.c.bf16 %v2142, %v2138
        %v2262 = vpack.c.bf16 %v2144, %v2140
        %v2263 = vpack.c.bf16 %v2150, %v2146
        %v2264 = vpack.c.bf16 %v2152, %v2148
        %v2265 = vpack.c.bf16 %v2158, %v2154
        %v2266 = vpack.c.bf16 %v2160, %v2156
        %v2271 = vunpack.c.l.b16 %v1577
        %v2272 = vunpack.c.h.b16 %v1577
        %v2273 = vunpack.c.l.b16 %v1578
        %v2274 = vunpack.c.h.b16 %v1578
        %v2275 = vunpack.c.l.b16 %v1579
        %v2276 = vunpack.c.h.b16 %v1579
        %v2277 = vunpack.c.l.b16 %v1580
        %v2278 = vunpack.c.h.b16 %v1580
        %v2279 = vpack.c.b16 %v2273, %v2271
        %v2280 = vpack.c.b16 %v2274, %v2272
        %v2281 = vpack.c.b16 %v2277, %v2275
        %v2282 = vpack.c.b16 %v2278, %v2276
        %2287 = vmatprep.subr.bf16.mxu0 %v2250
        %2288 = vmatpush1.bf16.msra.mxu0 %v2249
        %2289 = vmatprep.subr.bf16.mxu0 %v2248
        %2290 = vmatpush1.bf16.msra.mxu0 %v2247
        %2291 = vmatprep.subr.bf16.mxu0 %v2246
        %2292 = vmatpush1.bf16.msra.mxu0 %v2245
        %2293 = vmatprep.subr.bf16.mxu0 %v2244
        %2294 = vmatpush1.bf16.msra.mxu0 %v2243
        %2295 = vmatprep.subr.bf16.mxu0 %v2242
        %2296 = vmatpush1.bf16.msra.mxu0 %v2241
        %2297 = vmatprep.subr.bf16.mxu0 %v2240
        %2298 = vmatpush1.bf16.msra.mxu0 %v2239
        %2299 = vmatprep.subr.bf16.mxu0 %v2238
        %2300 = vmatpush1.bf16.msra.mxu0 %v2237
        %2301 = vmatprep.subr.bf16.mxu0 %v2236
        %2302 = vmatpush1.bf16.msra.mxu0 %v2235
        %2303 = vmatprep.subr.bf16.mxu0 %v2266
        %2304 = vmatpush2.bf16.msra.mxu0 %v2265
        %2305 = vmatprep.subr.bf16.mxu0 %v2264
        %2306 = vmatpush2.bf16.msra.mxu0 %v2263
        %2307 = vmatprep.subr.bf16.mxu0 %v2262
        %2308 = vmatpush2.bf16.msra.mxu0 %v2261
        %2309 = vmatprep.subr.bf16.mxu0 %v2260
        %2310 = vmatpush2.bf16.msra.mxu0 %v2259
        %2311 = vmatprep.subr.bf16.mxu0 %v2258
        %2312 = vmatpush2.bf16.msra.mxu0 %v2257
        %2313 = vmatprep.subr.bf16.mxu0 %v2256
        %2314 = vmatpush2.bf16.msra.mxu0 %v2255
        %2315 = vmatprep.subr.bf16.mxu0 %v2254
        %2316 = vmatpush2.bf16.msra.mxu0 %v2253
        %2317 = vmatprep.subr.bf16.mxu0 %v2252
        %2318 = vmatpush2.bf16.msra.mxu0 %v2251
        %2319 = vmatprep.mubr.bf16.mxu0 %v2280
        %2320 = vmatmul.mubr.bf16.gmra.mxu0 %v2279
        %v2321 = vpop.f32.mrf.mxu0
        %v2322 = vadd.f32 0.0, %v2321
        %v2323 = vpop.f32.mrf.mxu0
        %v2324 = vadd.f32 0.0, %v2323
        %v2325 = vpop.f32.mrf.mxu0
        %v2326 = vadd.f32 0.0, %v2325
        %v2327 = vpop.f32.mrf.mxu0
        %v2328 = vadd.f32 0.0, %v2327
        %2329 = vmatprep.mubr.bf16.mxu0 %v2282
        %2330 = vmatmul.mubr.bf16.gmra.mxu0 %v2281
        %v2331 = vpop.f32.mrf.mxu0
        %v2332 = vadd.f32 0.0, %v2331
        %v2333 = vpop.f32.mrf.mxu0
        %v2334 = vadd.f32 0.0, %v2333
        %v2335 = vpop.f32.mrf.mxu0
        %v2336 = vadd.f32 0.0, %v2335
        %v2337 = vpop.f32.mrf.mxu0
        %v2338 = vadd.f32 0.0, %v2337
        %2339 = vdwg.mxu0
        %v2340 = vrcp.pop %v2197
        %v2341 = vrcp.pop %v2234
        %v2342 = vmul.f32 %v2322, %v2340
        %v2343 = vmul.f32 %v2324, %v2341
        %v2344 = vmul.f32 %v2326, %v2340
        %v2345 = vmul.f32 %v2328, %v2341
        %v2346 = vmul.f32 %v2332, %v2340
        %v2347 = vmul.f32 %v2334, %v2341
        %v2348 = vmul.f32 %v2336, %v2340
        %v2349 = vmul.f32 %v2338, %v2341
        %v2350 = vpack.c.bf16 %v2344, %v2342
        %v2351 = vpack.c.bf16 %v2345, %v2343
        %v2352 = vpack.c.bf16 %v2348, %v2346
        %v2353 = vpack.c.bf16 %v2349, %v2347
        %v2358 = vunpack.c.l.b16 %v2350
        %v2359 = vunpack.c.l.b16 %v2351
        %v2360 = vunpack.c.h.b16 %v2350
        %v2361 = vunpack.c.h.b16 %v2351
        %v2362 = vunpack.c.l.b16 %v2352
        %v2363 = vunpack.c.l.b16 %v2353
        %v2364 = vunpack.c.h.b16 %v2352
        %v2365 = vunpack.c.h.b16 %v2353
        %v2366 = vpack.c.b16 %v2359, %v2358
        %v2367 = vpack.c.b16 %v2361, %v2360
        %v2368 = vpack.c.b16 %v2363, %v2362
        %v2369 = vpack.c.b16 %v2365, %v2364
        %s2374 = smul.addr %s1558, 4
        %s2375 = scalar_lea.vmem [#allocation3], %s2374
        %2376 = vst [vmem:[%s2375] sm:$0xff] %v2366
        %2377 = vst [vmem:[%s2375 + $0x8] sm:$0xff] %v2367
        %2378 = vst [vmem:[%s2375 + $0x10] sm:$0xff] %v2368
        %2379 = vst [vmem:[%s2375 + $0x18] sm:$0xff] %v2369
      $region45: #{_lambda_.1} parent=39 // loop_footer
        %s1557 = sadd.s32 1, %s1553
      $region46: #{_lambda_.1} parent=39 // loop_footer_branch
        %1552 = sbr.rel target = $region42
      $region47: #{_lambda_.1} parent=39 // loop_exit
        _
      %v2380 = vld [vmem:[#allocation3] sm:$0xff]
      %v2381 = vld [vmem:[#allocation3 + $0x8] sm:$0xff]
      %v2382 = vld [vmem:[#allocation3 + $0x10] sm:$0xff]
      %v2383 = vld [vmem:[#allocation3 + $0x18] sm:$0xff]
      %v2384 = vld [vmem:[#allocation3 + $0x20] sm:$0xff]
      %v2385 = vld [vmem:[#allocation3 + $0x28] sm:$0xff]
      %v2386 = vld [vmem:[#allocation3 + $0x30] sm:$0xff]
      %v2387 = vld [vmem:[#allocation3 + $0x38] sm:$0xff]
      %v2388 = vld [vmem:[#allocation3 + $0x40] sm:$0xff]
      %v2389 = vld [vmem:[#allocation3 + $0x48] sm:$0xff]
      %v2390 = vld [vmem:[#allocation3 + $0x50] sm:$0xff]
      %v2391 = vld [vmem:[#allocation3 + $0x58] sm:$0xff]
      %v2392 = vld [vmem:[#allocation3 + $0x60] sm:$0xff]
      %v2393 = vld [vmem:[#allocation3 + $0x68] sm:$0xff]
      %v2394 = vld [vmem:[#allocation3 + $0x70] sm:$0xff]
      %v2395 = vld [vmem:[#allocation3 + $0x78] sm:$0xff]
      %v2396 = vld [vmem:[%s3] sm:$0xf]
      %v2397 = vld [vmem:[%s3 + $0x4] sm:$0xf]
      %v2398 = vld [vmem:[%s3 + $0x8] sm:$0xf]
      %v2399 = vld [vmem:[%s3 + $0xc] sm:$0xf]
      %v2400 = vld [vmem:[%s3 + $0x10] sm:$0xf]
      %v2401 = vld [vmem:[%s3 + $0x14] sm:$0xf]
      %v2402 = vld [vmem:[%s3 + $0x18] sm:$0xf]
      %v2403 = vld [vmem:[%s3 + $0x1c] sm:$0xf]
      %v2404 = vld [vmem:[%s3 + $0x20] sm:$0xf]
      %v2405 = vld [vmem:[%s3 + $0x24] sm:$0xf]
      %v2406 = vld [vmem:[%s3 + $0x28] sm:$0xf]
      %v2407 = vld [vmem:[%s3 + $0x2c] sm:$0xf]
      %v2408 = vld [vmem:[%s3 + $0x30] sm:$0xf]
      %v2409 = vld [vmem:[%s3 + $0x34] sm:$0xf]
      %v2410 = vld [vmem:[%s3 + $0x38] sm:$0xf]
      %v2411 = vld [vmem:[%s3 + $0x3c] sm:$0xf]
      %v2412 = vld [vmem:[%s4] sm:$0xff]
      %v2413 = vld [vmem:[%s4 + $0x8] sm:$0xff]
      %v2414 = vld [vmem:[%s4 + $0x10] sm:$0xff]
      %v2415 = vld [vmem:[%s4 + $0x18] sm:$0xff]
      %v2416 = vld [vmem:[%s4 + $0x20] sm:$0xff]
      %v2417 = vld [vmem:[%s4 + $0x28] sm:$0xff]
      %v2418 = vld [vmem:[%s4 + $0x30] sm:$0xff]
      %v2419 = vld [vmem:[%s4 + $0x38] sm:$0xff]
      %v2420 = vld [vmem:[%s4 + $0x40] sm:$0xff]
      %v2421 = vld [vmem:[%s4 + $0x48] sm:$0xff]
      %v2422 = vld [vmem:[%s4 + $0x50] sm:$0xff]
      %v2423 = vld [vmem:[%s4 + $0x58] sm:$0xff]
      %v2424 = vld [vmem:[%s4 + $0x60] sm:$0xff]
      %v2425 = vld [vmem:[%s4 + $0x68] sm:$0xff]
      %v2426 = vld [vmem:[%s4 + $0x70] sm:$0xff]
      %v2427 = vld [vmem:[%s4 + $0x78] sm:$0xff]
      %2429 = vset.pattern.permute.xlu0 0
      %2430 = vperm.xlu0 %2429, %v2412
      %v2431 = vpop.permute.xlu0 %2430
      %2434 = vset.pattern.permute.xlu0 0
      %2435 = vperm.xlu0 %2434, %v2413
      %v2436 = vpop.permute.xlu0 %2435
      %2439 = vset.pattern.permute.xlu0 0
      %2440 = vperm.xlu0 %2439, %v2414
      %v2441 = vpop.permute.xlu0 %2440
      %2444 = vset.pattern.permute.xlu0 0
      %2445 = vperm.xlu0 %2444, %v2415
      %v2446 = vpop.permute.xlu0 %2445
      %2449 = vset.pattern.permute.xlu0 0
      %2450 = vperm.xlu0 %2449, %v2416
      %v2451 = vpop.permute.xlu0 %2450
      %2454 = vset.pattern.permute.xlu0 0
      %2455 = vperm.xlu0 %2454, %v2417
      %v2456 = vpop.permute.xlu0 %2455
      %2459 = vset.pattern.permute.xlu0 0
      %2460 = vperm.xlu0 %2459, %v2418
      %v2461 = vpop.permute.xlu0 %2460
      %2464 = vset.pattern.permute.xlu0 0
      %2465 = vperm.xlu0 %2464, %v2419
      %v2466 = vpop.permute.xlu0 %2465
      %2469 = vset.pattern.permute.xlu0 0
      %2470 = vperm.xlu0 %2469, %v2420
      %v2471 = vpop.permute.xlu0 %2470
      %2474 = vset.pattern.permute.xlu0 0
      %2475 = vperm.xlu0 %2474, %v2421
      %v2476 = vpop.permute.xlu0 %2475
      %2479 = vset.pattern.permute.xlu0 0
      %2480 = vperm.xlu0 %2479, %v2422
      %v2481 = vpop.permute.xlu0 %2480
      %2484 = vset.pattern.permute.xlu0 0
      %2485 = vperm.xlu0 %2484, %v2423
      %v2486 = vpop.permute.xlu0 %2485
      %2489 = vset.pattern.permute.xlu0 0
      %2490 = vperm.xlu0 %2489, %v2424
      %v2491 = vpop.permute.xlu0 %2490
      %2494 = vset.pattern.permute.xlu0 0
      %2495 = vperm.xlu0 %2494, %v2425
      %v2496 = vpop.permute.xlu0 %2495
      %2499 = vset.pattern.permute.xlu0 0
      %2500 = vperm.xlu0 %2499, %v2426
      %v2501 = vpop.permute.xlu0 %2500
      %2504 = vset.pattern.permute.xlu0 0
      %2505 = vperm.xlu0 %2504, %v2427
      %v2506 = vpop.permute.xlu0 %2505
      %v2524 = vunpack.c.l.b16 %v2396
      %v2525 = vunpack.c.l.b16 %v2397
      %v2526 = vunpack.c.l.b16 %v2398
      %v2527 = vunpack.c.l.b16 %v2399
      %v2528 = vunpack.c.l.b16 %v2400
      %v2529 = vunpack.c.l.b16 %v2401
      %v2530 = vunpack.c.l.b16 %v2402
      %v2531 = vunpack.c.l.b16 %v2403
      %v2532 = vunpack.c.l.b16 %v2404
      %v2533 = vunpack.c.l.b16 %v2405
      %v2534 = vunpack.c.l.b16 %v2406
      %v2535 = vunpack.c.l.b16 %v2407
      %v2536 = vunpack.c.l.b16 %v2408
      %v2537 = vunpack.c.l.b16 %v2409
      %v2538 = vunpack.c.l.b16 %v2410
      %v2539 = vunpack.c.l.b16 %v2411
      %v2540 = vpack.c.b16 %v2525, %v2524
      %v2541 = vpack.c.b16 %v2527, %v2526
      %v2542 = vpack.c.b16 %v2529, %v2528
      %v2543 = vpack.c.b16 %v2531, %v2530
      %v2544 = vpack.c.b16 %v2533, %v2532
      %v2545 = vpack.c.b16 %v2535, %v2534
      %v2546 = vpack.c.b16 %v2537, %v2536
      %v2547 = vpack.c.b16 %v2539, %v2538
      %v2572 = vunpack.c.l.b16 %v2380
      %v2573 = vunpack.c.h.b16 %v2380
      %v2574 = vunpack.c.l.b16 %v2381
      %v2575 = vunpack.c.h.b16 %v2381
      %v2576 = vunpack.c.l.b16 %v2382
      %v2577 = vunpack.c.h.b16 %v2382
      %v2578 = vunpack.c.l.b16 %v2383
      %v2579 = vunpack.c.h.b16 %v2383
      %v2580 = vunpack.c.l.b16 %v2384
      %v2581 = vunpack.c.h.b16 %v2384
      %v2582 = vunpack.c.l.b16 %v2385
      %v2583 = vunpack.c.h.b16 %v2385
      %v2584 = vunpack.c.l.b16 %v2386
      %v2585 = vunpack.c.h.b16 %v2386
      %v2586 = vunpack.c.l.b16 %v2387
      %v2587 = vunpack.c.h.b16 %v2387
      %v2588 = vunpack.c.l.b16 %v2388
      %v2589 = vunpack.c.h.b16 %v2388
      %v2590 = vunpack.c.l.b16 %v2389
      %v2591 = vunpack.c.h.b16 %v2389
      %v2592 = vunpack.c.l.b16 %v2390
      %v2593 = vunpack.c.h.b16 %v2390
      %v2594 = vunpack.c.l.b16 %v2391
      %v2595 = vunpack.c.h.b16 %v2391
      %v2596 = vunpack.c.l.b16 %v2392
      %v2597 = vunpack.c.h.b16 %v2392
      %v2598 = vunpack.c.l.b16 %v2393
      %v2599 = vunpack.c.h.b16 %v2393
      %v2600 = vunpack.c.l.b16 %v2394
      %v2601 = vunpack.c.h.b16 %v2394
      %v2602 = vunpack.c.l.b16 %v2395
      %v2603 = vunpack.c.h.b16 %v2395
      %v2604 = vpack.c.b16 %v2574, %v2572
      %v2605 = vpack.c.b16 %v2575, %v2573
      %v2606 = vpack.c.b16 %v2578, %v2576
      %v2607 = vpack.c.b16 %v2579, %v2577
      %v2608 = vpack.c.b16 %v2582, %v2580
      %v2609 = vpack.c.b16 %v2583, %v2581
      %v2610 = vpack.c.b16 %v2586, %v2584
      %v2611 = vpack.c.b16 %v2587, %v2585
      %v2612 = vpack.c.b16 %v2590, %v2588
      %v2613 = vpack.c.b16 %v2591, %v2589
      %v2614 = vpack.c.b16 %v2594, %v2592
      %v2615 = vpack.c.b16 %v2595, %v2593
      %v2616 = vpack.c.b16 %v2598, %v2596
      %v2617 = vpack.c.b16 %v2599, %v2597
      %v2618 = vpack.c.b16 %v2602, %v2600
      %v2619 = vpack.c.b16 %v2603, %v2601
      %2636 = vmatprep.subr.bf16.mxu0 %v2619
      %2637 = vmatpush1.bf16.msra.mxu0 %v2618
      %2638 = vmatprep.subr.bf16.mxu0 %v2617
      %2639 = vmatpush1.bf16.msra.mxu0 %v2616
      %2640 = vmatprep.subr.bf16.mxu0 %v2615
      %2641 = vmatpush1.bf16.msra.mxu0 %v2614
      %2642 = vmatprep.subr.bf16.mxu0 %v2613
      %2643 = vmatpush1.bf16.msra.mxu0 %v2612
      %2644 = vmatprep.subr.bf16.mxu0 %v2611
      %2645 = vmatpush1.bf16.msra.mxu0 %v2610
      %2646 = vmatprep.subr.bf16.mxu0 %v2609
      %2647 = vmatpush1.bf16.msra.mxu0 %v2608
      %2648 = vmatprep.subr.bf16.mxu0 %v2607
      %2649 = vmatpush1.bf16.msra.mxu0 %v2606
      %2650 = vmatprep.subr.bf16.mxu0 %v2605
      %2651 = vmatpush1.bf16.msra.mxu0 %v2604
      %2652 = vmatprep.subr.bf16.mxu0 0
      %2653 = vmatpush2.bf16.msra.mxu0 0
      %2654 = vmatprep.subr.bf16.mxu0 0
      %2655 = vmatpush2.bf16.msra.mxu0 0
      %2656 = vmatprep.subr.bf16.mxu0 0
      %2657 = vmatpush2.bf16.msra.mxu0 0
      %2658 = vmatprep.subr.bf16.mxu0 0
      %2659 = vmatpush2.bf16.msra.mxu0 0
      %2660 = vmatprep.subr.bf16.mxu0 0
      %2661 = vmatpush2.bf16.msra.mxu0 0
      %2662 = vmatprep.subr.bf16.mxu0 0
      %2663 = vmatpush2.bf16.msra.mxu0 0
      %2664 = vmatprep.subr.bf16.mxu0 0
      %2665 = vmatpush2.bf16.msra.mxu0 0
      %2666 = vmatprep.subr.bf16.mxu0 0
      %2667 = vmatpush2.bf16.msra.mxu0 0
      %2668 = vmatprep.mubr.bf16.mxu0 0
      %2669 = vmatmul.mubr.bf16.gmra.mxu0 %v2540
      %v2670 = vpop.f32.mrf.mxu0
      %v2671 = vadd.f32 %v2431, %v2670
      %v2672 = vpop.f32.mrf.mxu0
      %v2673 = vadd.f32 %v2431, %v2672
      %v2674 = vpop.f32.mrf.mxu0
      %v2675 = vadd.f32 %v2436, %v2674
      %v2676 = vpop.f32.mrf.mxu0
      %v2677 = vadd.f32 %v2436, %v2676
      %2678 = vmatprep.mubr.bf16.mxu0 0
      %2679 = vmatmul.mubr.bf16.gmra.mxu0 %v2541
      %v2680 = vpop.f32.mrf.mxu0
      %v2681 = vadd.f32 %v2441, %v2680
      %v2682 = vpop.f32.mrf.mxu0
      %v2683 = vadd.f32 %v2441, %v2682
      %v2684 = vpop.f32.mrf.mxu0
      %v2685 = vadd.f32 %v2446, %v2684
      %v2686 = vpop.f32.mrf.mxu0
      %v2687 = vadd.f32 %v2446, %v2686
      %2688 = vmatprep.mubr.bf16.mxu0 0
      %2689 = vmatmul.mubr.bf16.gmra.mxu0 %v2542
      %v2690 = vpop.f32.mrf.mxu0
      %v2691 = vadd.f32 %v2451, %v2690
      %v2692 = vpop.f32.mrf.mxu0
      %v2693 = vadd.f32 %v2451, %v2692
      %v2694 = vpop.f32.mrf.mxu0
      %v2695 = vadd.f32 %v2456, %v2694
      %v2696 = vpop.f32.mrf.mxu0
      %v2697 = vadd.f32 %v2456, %v2696
      %2698 = vmatprep.mubr.bf16.mxu0 0
      %2699 = vmatmul.mubr.bf16.gmra.mxu0 %v2543
      %v2700 = vpop.f32.mrf.mxu0
      %v2701 = vadd.f32 %v2461, %v2700
      %v2702 = vpop.f32.mrf.mxu0
      %v2703 = vadd.f32 %v2461, %v2702
      %v2704 = vpop.f32.mrf.mxu0
      %v2705 = vadd.f32 %v2466, %v2704
      %v2706 = vpop.f32.mrf.mxu0
      %v2707 = vadd.f32 %v2466, %v2706
      %2708 = vmatprep.mubr.bf16.mxu0 0
      %2709 = vmatmul.mubr.bf16.gmra.mxu0 %v2544
      %v2710 = vpop.f32.mrf.mxu0
      %v2711 = vadd.f32 %v2471, %v2710
      %v2712 = vpop.f32.mrf.mxu0
      %v2713 = vadd.f32 %v2471, %v2712
      %v2714 = vpop.f32.mrf.mxu0
      %v2715 = vadd.f32 %v2476, %v2714
      %v2716 = vpop.f32.mrf.mxu0
      %v2717 = vadd.f32 %v2476, %v2716
      %2718 = vmatprep.mubr.bf16.mxu0 0
      %2719 = vmatmul.mubr.bf16.gmra.mxu0 %v2545
      %v2720 = vpop.f32.mrf.mxu0
      %v2721 = vadd.f32 %v2481, %v2720
      %v2722 = vpop.f32.mrf.mxu0
      %v2723 = vadd.f32 %v2481, %v2722
      %v2724 = vpop.f32.mrf.mxu0
      %v2725 = vadd.f32 %v2486, %v2724
      %v2726 = vpop.f32.mrf.mxu0
      %v2727 = vadd.f32 %v2486, %v2726
      %2728 = vmatprep.mubr.bf16.mxu0 0
      %2729 = vmatmul.mubr.bf16.gmra.mxu0 %v2546
      %v2730 = vpop.f32.mrf.mxu0
      %v2731 = vadd.f32 %v2491, %v2730
      %v2732 = vpop.f32.mrf.mxu0
      %v2733 = vadd.f32 %v2491, %v2732
      %v2734 = vpop.f32.mrf.mxu0
      %v2735 = vadd.f32 %v2496, %v2734
      %v2736 = vpop.f32.mrf.mxu0
      %v2737 = vadd.f32 %v2496, %v2736
      %2738 = vmatprep.mubr.bf16.mxu0 0
      %2739 = vmatmul.mubr.bf16.gmra.mxu0 %v2547
      %v2740 = vpop.f32.mrf.mxu0
      %v2741 = vadd.f32 %v2501, %v2740
      %v2742 = vpop.f32.mrf.mxu0
      %v2743 = vadd.f32 %v2501, %v2742
      %v2744 = vpop.f32.mrf.mxu0
      %v2745 = vadd.f32 %v2506, %v2744
      %v2746 = vpop.f32.mrf.mxu0
      %v2747 = vadd.f32 %v2506, %v2746
      %2748 = vdwg.mxu0
      %v2749 = vld [vmem:[%s219] sm:$0xff]
      %v2750 = vld [vmem:[%s219 + $0x8] sm:$0xff]
      %v2751 = vld [vmem:[%s219 + $0x10] sm:$0xff]
      %v2752 = vld [vmem:[%s219 + $0x18] sm:$0xff]
      %v2753 = vld [vmem:[%s219 + $0x20] sm:$0xff]
      %v2754 = vld [vmem:[%s219 + $0x28] sm:$0xff]
      %v2755 = vld [vmem:[%s219 + $0x30] sm:$0xff]
      %v2756 = vld [vmem:[%s219 + $0x38] sm:$0xff]
      %v2757 = vld [vmem:[%s219 + $0x40] sm:$0xff]
      %v2758 = vld [vmem:[%s219 + $0x48] sm:$0xff]
      %v2759 = vld [vmem:[%s219 + $0x50] sm:$0xff]
      %v2760 = vld [vmem:[%s219 + $0x58] sm:$0xff]
      %v2761 = vld [vmem:[%s219 + $0x60] sm:$0xff]
      %v2762 = vld [vmem:[%s219 + $0x68] sm:$0xff]
      %v2763 = vld [vmem:[%s219 + $0x70] sm:$0xff]
      %v2764 = vld [vmem:[%s219 + $0x78] sm:$0xff]
      %v2765 = vld [vmem:[%s219 + $0x80] sm:$0xff]
      %v2766 = vld [vmem:[%s219 + $0x88] sm:$0xff]
      %v2767 = vld [vmem:[%s219 + $0x90] sm:$0xff]
      %v2768 = vld [vmem:[%s219 + $0x98] sm:$0xff]
      %v2769 = vld [vmem:[%s219 + $0xa0] sm:$0xff]
      %v2770 = vld [vmem:[%s219 + $0xa8] sm:$0xff]
      %v2771 = vld [vmem:[%s219 + $0xb0] sm:$0xff]
      %v2772 = vld [vmem:[%s219 + $0xb8] sm:$0xff]
      %v2773 = vld [vmem:[%s219 + $0xc0] sm:$0xff]
      %v2774 = vld [vmem:[%s219 + $0xc8] sm:$0xff]
      %v2775 = vld [vmem:[%s219 + $0xd0] sm:$0xff]
      %v2776 = vld [vmem:[%s219 + $0xd8] sm:$0xff]
      %v2777 = vld [vmem:[%s219 + $0xe0] sm:$0xff]
      %v2778 = vld [vmem:[%s219 + $0xe8] sm:$0xff]
      %v2779 = vld [vmem:[%s219 + $0xf0] sm:$0xff]
      %v2780 = vld [vmem:[%s219 + $0xf8] sm:$0xff]
      %v2781 = vadd.f32 %v2671, %v2749
      %v2782 = vadd.f32 %v2673, %v2750
      %v2783 = vadd.f32 %v2675, %v2751
      %v2784 = vadd.f32 %v2677, %v2752
      %v2785 = vadd.f32 %v2681, %v2753
      %v2786 = vadd.f32 %v2683, %v2754
      %v2787 = vadd.f32 %v2685, %v2755
      %v2788 = vadd.f32 %v2687, %v2756
      %v2789 = vadd.f32 %v2691, %v2757
      %v2790 = vadd.f32 %v2693, %v2758
      %v2791 = vadd.f32 %v2695, %v2759
      %v2792 = vadd.f32 %v2697, %v2760
      %v2793 = vadd.f32 %v2701, %v2761
      %v2794 = vadd.f32 %v2703, %v2762
      %v2795 = vadd.f32 %v2705, %v2763
      %v2796 = vadd.f32 %v2707, %v2764
      %v2797 = vadd.f32 %v2711, %v2765
      %v2798 = vadd.f32 %v2713, %v2766
      %v2799 = vadd.f32 %v2715, %v2767
      %v2800 = vadd.f32 %v2717, %v2768
      %v2801 = vadd.f32 %v2721, %v2769
      %v2802 = vadd.f32 %v2723, %v2770
      %v2803 = vadd.f32 %v2725, %v2771
      %v2804 = vadd.f32 %v2727, %v2772
      %v2805 = vadd.f32 %v2731, %v2773
      %v2806 = vadd.f32 %v2733, %v2774
      %v2807 = vadd.f32 %v2735, %v2775
      %v2808 = vadd.f32 %v2737, %v2776
      %v2809 = vadd.f32 %v2741, %v2777
      %v2810 = vadd.f32 %v2743, %v2778
      %v2811 = vadd.f32 %v2745, %v2779
      %v2812 = vadd.f32 %v2747, %v2780
      %2813 = vst [vmem:[%s224] sm:$0xff] %v2781
      %2814 = vst [vmem:[%s224 + $0x8] sm:$0xff] %v2782
      %2815 = vst [vmem:[%s224 + $0x10] sm:$0xff] %v2783
      %2816 = vst [vmem:[%s224 + $0x18] sm:$0xff] %v2784
      %2817 = vst [vmem:[%s224 + $0x20] sm:$0xff] %v2785
      %2818 = vst [vmem:[%s224 + $0x28] sm:$0xff] %v2786
      %2819 = vst [vmem:[%s224 + $0x30] sm:$0xff] %v2787
      %2820 = vst [vmem:[%s224 + $0x38] sm:$0xff] %v2788
      %2821 = vst [vmem:[%s224 + $0x40] sm:$0xff] %v2789
      %2822 = vst [vmem:[%s224 + $0x48] sm:$0xff] %v2790
      %2823 = vst [vmem:[%s224 + $0x50] sm:$0xff] %v2791
      %2824 = vst [vmem:[%s224 + $0x58] sm:$0xff] %v2792
      %2825 = vst [vmem:[%s224 + $0x60] sm:$0xff] %v2793
      %2826 = vst [vmem:[%s224 + $0x68] sm:$0xff] %v2794
      %2827 = vst [vmem:[%s224 + $0x70] sm:$0xff] %v2795
      %2828 = vst [vmem:[%s224 + $0x78] sm:$0xff] %v2796
      %2829 = vst [vmem:[%s224 + $0x80] sm:$0xff] %v2797
      %2830 = vst [vmem:[%s224 + $0x88] sm:$0xff] %v2798
      %2831 = vst [vmem:[%s224 + $0x90] sm:$0xff] %v2799
      %2832 = vst [vmem:[%s224 + $0x98] sm:$0xff] %v2800
      %2833 = vst [vmem:[%s224 + $0xa0] sm:$0xff] %v2801
      %2834 = vst [vmem:[%s224 + $0xa8] sm:$0xff] %v2802
      %2835 = vst [vmem:[%s224 + $0xb0] sm:$0xff] %v2803
      %2836 = vst [vmem:[%s224 + $0xb8] sm:$0xff] %v2804
      %2837 = vst [vmem:[%s224 + $0xc0] sm:$0xff] %v2805
      %2838 = vst [vmem:[%s224 + $0xc8] sm:$0xff] %v2806
      %2839 = vst [vmem:[%s224 + $0xd0] sm:$0xff] %v2807
      %2840 = vst [vmem:[%s224 + $0xd8] sm:$0xff] %v2808
      %2841 = vst [vmem:[%s224 + $0xe0] sm:$0xff] %v2809
      %2842 = vst [vmem:[%s224 + $0xe8] sm:$0xff] %v2810
      %2843 = vst [vmem:[%s224 + $0xf0] sm:$0xff] %v2811
      %2844 = vst [vmem:[%s224 + $0xf8] sm:$0xff] %v2812
      %p2845 = scmp.lt.s32.totalorder %s16, 1
      %s2846 = scalar_select %p2845, %s16, 1
      %s2847 = smul.addr %s2846, 32
      %s2848 = smul.addr %s2847, 8
      %s2849 = scalar_lea.vmem %s5, %s2848
      // Predicated region
      $region48: #{_lambda_.1} parent=39 // pred_check
        %p2850 = pneg %p144
      $region49: #{_lambda_.1} parent=39 // pred_check_branch
        %2852 = sbr.rel (%p2850) target = $region51
      $region50: #{_lambda_.1} parent=39 // pred_region
        _
      $region51: #{_lambda_.1} parent=39 // pred_fallthru
        _
    $region40: #{_lambda_.1} parent=5 // pred_fallthru
      _
    %p2853 = scmp.le.s32.totalorder 2, %s11
    // Predicated region
    $region52: #{_lambda_.1} parent=5 // pred_check
      %p2854 = pneg %p2853
    $region53: #{_lambda_.1} parent=5 // pred_check_branch
      %2856 = sbr.rel (%p2854) target = $region55
    $region54: #{_lambda_.1} parent=5 // pred_region
      %s2857 = ssub.s32 %s11, 2
      // Predicated region
      $region56: #{_lambda_.1} parent=54 // pred_check
        %p2858 = pneg %p150
      $region57: #{_lambda_.1} parent=54 // pred_check_branch
        %2860 = sbr.rel (%p2858) target = $region59
      $region58: #{_lambda_.1} parent=54 // pred_region
        %p2861 = scmp.lt.s32.totalorder %s17, 1
        %s2862 = scalar_select %p2861, %s17, 1
        %s2863 = smul.addr %s2862, 32
        %s2864 = smul.addr %s2863, 8
        %s2865 = scalar_lea.vmem %s5, %s2864
      $region59: #{_lambda_.1} parent=54 // pred_fallthru
        _
    $region55: #{_lambda_.1} parent=5 // pred_fallthru
      _
  $region6: #{_lambda_.1} parent=0 // loop_footer
    %s15 = sadd.s32 1, %s11
  $region7: #{_lambda_.1} parent=0 // loop_footer_branch
    %10 = sbr.rel target = $region3
  $region8: #{_lambda_.1} parent=0 // loop_exit
    _

</llo_original>
